<compile_context>
chip_gen: v6e
topology: v6e:2x2x1
jax: 0.10.0
libtpu: 0.0.40
codegen_flags: <defaults>
</compile_context>

<pallas_src>
import math

import jax
import jax.numpy as jnp
from jax.experimental import pallas as pl
from jax.experimental.pallas import tpu as pltpu


def gmm_kernel(x_ref, wsq_ref, wlin_ref, bias_ref, prior_ref, out_ref):
    # x_ref:     (TILE_N, D)  examples tile
    # wsq_ref:   (D, K)       = (-0.5 * exp(-logvar)).T        (resident)
    # wlin_ref:  (D, K)       = (mu * exp(-logvar)).T          (resident)
    # bias_ref:  (K, 1)       per-component constant           (resident)
    # prior_ref: (1, TILE_N)  normalized log-priors (PyTorch trailing broadcast)
    # out_ref:   (K, TILE_N)  log posteriors, lane-dense on the examples axis
    x = x_ref[...]                                              # (TILE_N, D) f32

    # --- quadratic form on the MXU: quad[n,k] = -0.5*sum_d((x-mu)^2*inv_var) + 0.5*sum_d(mu^2*inv_var)
    quad = jnp.dot(x * x, wsq_ref[...], preferred_element_type=jnp.float32)
    quad = quad + jnp.dot(x, wlin_ref[...], preferred_element_type=jnp.float32)

    # --- switch to lane-dense (K, TILE_N) layout for the rest + the store ---
    ll = jnp.transpose(quad) + bias_ref[...]                    # (K, TILE_N)

    # weighted = ll + norm_logpriors  (faithful PyTorch trailing-dim broadcast:
    # priors indexed by example; requires N == K, enforced in the wrapper)
    weighted = ll + prior_ref[...]                              # (K, TILE_N)

    # --- stabilized logsumexp over components (axis 0) ---
    m = jnp.max(weighted, axis=0, keepdims=True)                # (1, TILE_N)
    denom = m + jnp.log(jnp.sum(jnp.exp(weighted - m), axis=0, keepdims=True))
    out_ref[...] = weighted - denom                             # (K, TILE_N)


def gmm_log_posteriors(x, mu, logvars, logpriors, *, tile_n=None):
    """x: (N, D), mu/logvars: (K, D), logpriors: (K,) -> (K, N) float32."""
    N, D = x.shape
    K, _ = mu.shape
    x = x.astype(jnp.float32)
    mu = mu.astype(jnp.float32)
    logvars = logvars.astype(jnp.float32)
    logpriors = logpriors.astype(jnp.float32)

    if N != K:
        # TODO(synk): the reference module's prior broadcast (K,N)+(K,) only
        # works when examples == n_components; a semantically-correct GMM would
        # add the priors as a (K,1) column instead.
        raise ValueError("reference module broadcast requires examples == n_components")

    # ---- parameter folding (K*D work, done once outside the grid) ----
    inv_var = jnp.exp(-logvars)                                 # (K, D)
    w_sq = (-0.5 * inv_var).T                                   # (D, K): multiplies x^2
    w_lin = (mu * inv_var).T                                    # (D, K): multiplies x
    bias = -0.5 * (jnp.sum(mu * mu * inv_var + logvars, axis=-1)
                   + D * jnp.log(2.0 * jnp.float32(math.pi)))   # (K,)
    bias_col = bias.reshape(K, 1)

    # ---- stabilized log-softmax of the priors (done once) ----
    lp_max = jnp.max(logpriors)
    norm_logpriors = logpriors - (lp_max + jnp.log(jnp.sum(jnp.exp(logpriors - lp_max))))
    prior_row = norm_logpriors.reshape(1, N)   # indexed by example (N == K)

    # ---- pick a lane-dense tile along the examples axis ----
    if tile_n is None:
        tile_n = N
        for cand in (1024, 512, 256, 128):     # largest that divides N; sized
            if N % cand == 0:                  # conservatively for v7x 64 MiB VMEM
                tile_n = cand
                break
    assert N % tile_n == 0, "tile_n must divide the number of examples"
    grid = (N // tile_n,)

    return pl.pallas_call(
        gmm_kernel,
        out_shape=jax.ShapeDtypeStruct((K, N), jnp.float32),
        grid_spec=pltpu.PrefetchScalarGridSpec(
            num_scalar_prefetch=0,
            grid=grid,
            in_specs=[
                pl.BlockSpec((tile_n, D), lambda i: (i, 0)),    # x tile
                pl.BlockSpec((D, K), lambda i: (0, 0)),         # w_sq  (resident)
                pl.BlockSpec((D, K), lambda i: (0, 0)),         # w_lin (resident)
                pl.BlockSpec((K, 1), lambda i: (0, 0)),         # bias  (resident)
                pl.BlockSpec((1, tile_n), lambda i: (0, i)),    # prior row tile
            ],
            out_specs=pl.BlockSpec((K, tile_n), lambda i: (0, i)),
        ),
        compiler_params=pltpu.CompilerParams(
            dimension_semantics=("parallel",),                  # v7x: 2 TCs
        ),
    )(x, w_sq, w_lin, bias_col, prior_row)


def reference_log_posteriors(x, mu, logvars, logpriors):
    """Pure-JAX reference mirroring the PyTorch module (unchanged semantics)."""
    a = (x[None, :, :] - mu[:, None, :]) ** 2
    lv = logvars[:, None, :]
    log_p = -0.5 * (lv + a / jnp.exp(lv)) - 0.5 * jnp.log(2.0 * jnp.float32(math.pi))
    ll = jnp.sum(log_p, axis=-1)                                # (K, N)
    norm_lp = logpriors - jnp.log(jnp.sum(jnp.exp(logpriors)))
    weighted = ll + norm_lp  # same trailing-dim broadcast as PyTorch (N == K)
    return weighted - jnp.log(jnp.sum(jnp.exp(weighted), axis=0, keepdims=True))


if __name__ == "__main__":
    # Module hyper-params: dims=D, n_components=K; examples N == K so the
    # module's prior broadcast is valid.  Shapes kept small.
    dims = 32
    n_components = 256
    n_examples = 256

    key = jax.random.PRNGKey(0)
    k_mu, k_x, k_lv, k_lp = jax.random.split(key, 4)

    mu = jax.random.normal(k_mu, (n_components, dims), dtype=jnp.float32)
    logvars = 0.1 * jax.random.normal(k_lv, (n_components, dims), dtype=jnp.float32)
    logpriors = 0.1 * jax.random.normal(k_lp, (n_components,), dtype=jnp.float32)
    x = jax.random.normal(k_x, (n_examples, dims), dtype=jnp.float32)

    ref = reference_log_posteriors(x, mu, logvars, logpriors)

    # Default tiling (single lane-dense block here).
    out = jax.block_until_ready(gmm_log_posteriors(x, mu, logvars, logpriors))
    assert out.shape == (n_components, n_examples)
    assert jnp.allclose(out, ref, atol=1e-3, rtol=1e-3), float(jnp.max(jnp.abs(out - ref)))

    # Forced smaller tile to exercise the multi-step pipelined grid.
    out2 = jax.block_until_ready(gmm_log_posteriors(x, mu, logvars, logpriors, tile_n=128))
    assert jnp.allclose(out2, ref, atol=1e-3, rtol=1e-3), float(jnp.max(jnp.abs(out2 - ref)))

    print("KERNEL_OK")
</pallas_src>

<mosaic_0001>
module attributes {stable_mosaic.version = 11 : i64} {
  func.func @gmm_kernel(%arg0: i32, %arg1: memref<256x32xf32, #tpu.memory_space<vmem>>, %arg2: memref<32x256xf32, #tpu.memory_space<vmem>>, %arg3: memref<32x256xf32, #tpu.memory_space<vmem>>, %arg4: memref<256x1xf32, #tpu.memory_space<vmem>>, %arg5: memref<1x256xf32, #tpu.memory_space<vmem>>, %arg6: memref<256x256xf32, #tpu.memory_space<vmem>>) attributes {dimension_semantics = [#tpu.dimension_semantics<parallel>], iteration_bounds = array<i64: 1>, scalar_prefetch = 0 : i64, scratch_operands = 0 : i64, tpu.core_type = #tpu.core_type<tc>, window_params = [{transform_indices = @transform_0, window_bounds = array<i64: 256, 32>}, {pipeline_mode = #tpu.pipeline_mode<synchronous>, transform_indices = @transform_1, window_bounds = array<i64: 32, 256>}, {pipeline_mode = #tpu.pipeline_mode<synchronous>, transform_indices = @transform_2, window_bounds = array<i64: 32, 256>}, {pipeline_mode = #tpu.pipeline_mode<synchronous>, transform_indices = @transform_3, window_bounds = array<i64: 256, 1>}, {transform_indices = @transform_4, window_bounds = array<i64: 1, 256>}, {transform_indices = @transform_5, window_bounds = array<i64: 256, 256>}]} {
    %c0 = arith.constant 0 : index
    %c0_0 = arith.constant 0 : index
    %0 = vector.load %arg1[%c0, %c0_0] : memref<256x32xf32, #tpu.memory_space<vmem>>, vector<256x32xf32>
    %1 = arith.mulf %0, %0 : vector<256x32xf32>
    %c0_1 = arith.constant 0 : index
    %c0_2 = arith.constant 0 : index
    %2 = vector.load %arg2[%c0_1, %c0_2] : memref<32x256xf32, #tpu.memory_space<vmem>>, vector<32x256xf32>
    %cst = arith.constant dense<0.000000e+00> : vector<256x256xf32>
    %3 = tpu.matmul %1, %2, %cst {dimension_numbers = #tpu.dot_dimension_numbers<[1], [0], [0], [1], [0, 0, 1, 1], [], []>} : vector<256x32xf32>, vector<32x256xf32>, vector<256x256xf32> -> vector<256x256xf32>
    %c0_3 = arith.constant 0 : index
    %c0_4 = arith.constant 0 : index
    %4 = vector.load %arg3[%c0_3, %c0_4] : memref<32x256xf32, #tpu.memory_space<vmem>>, vector<32x256xf32>
    %cst_5 = arith.constant dense<0.000000e+00> : vector<256x256xf32>
    %5 = tpu.matmul %0, %4, %cst_5 {dimension_numbers = #tpu.dot_dimension_numbers<[1], [0], [0], [1], [0, 0, 1, 1], [], []>} : vector<256x32xf32>, vector<32x256xf32>, vector<256x256xf32> -> vector<256x256xf32>
    %6 = arith.addf %3, %5 : vector<256x256xf32>
    %7 = tpu.transpose %6, [1, 0] : vector<256x256xf32> -> vector<256x256xf32>
    %c0_6 = arith.constant 0 : index
    %c0_7 = arith.constant 0 : index
    %8 = vector.load %arg4[%c0_6, %c0_7] : memref<256x1xf32, #tpu.memory_space<vmem>>, vector<256x1xf32>
    %9 = vector.broadcast %8 : vector<256x1xf32> to vector<256x256xf32>
    %10 = arith.addf %7, %9 : vector<256x256xf32>
    %c0_8 = arith.constant 0 : index
    %c0_9 = arith.constant 0 : index
    %11 = vector.load %arg5[%c0_8, %c0_9] : memref<1x256xf32, #tpu.memory_space<vmem>>, vector<1x256xf32>
    %12 = vector.broadcast %11 : vector<1x256xf32> to vector<256x256xf32>
    %13 = arith.addf %10, %12 : vector<256x256xf32>
    %cst_10 = arith.constant dense<0xFF800000> : vector<256xf32>
    %14 = vector.multi_reduction <maximumf>, %13, %cst_10 [0] : vector<256x256xf32> to vector<256xf32>
    %15 = vector.shape_cast %14 : vector<256xf32> to vector<1x256xf32>
    %16 = vector.broadcast %15 : vector<1x256xf32> to vector<256x256xf32>
    %17 = arith.subf %13, %16 : vector<256x256xf32>
    %18 = math.exp %17 : vector<256x256xf32>
    %cst_11 = arith.constant dense<0.000000e+00> : vector<256xf32>
    %19 = vector.multi_reduction <add>, %18, %cst_11 [0] : vector<256x256xf32> to vector<256xf32>
    %20 = vector.shape_cast %19 : vector<256xf32> to vector<1x256xf32>
    %21 = math.log %20 : vector<1x256xf32>
    %22 = arith.addf %15, %21 : vector<1x256xf32>
    %23 = vector.broadcast %22 : vector<1x256xf32> to vector<256x256xf32>
    %24 = arith.subf %13, %23 : vector<256x256xf32>
    %c0_12 = arith.constant 0 : index
    %c0_13 = arith.constant 0 : index
    %25 = vector.load %arg6[%c0_12, %c0_13] : memref<256x256xf32, #tpu.memory_space<vmem>>, vector<256x256xf32>
    tpu.vector_store %arg6[%c0_12, %c0_13], %24 {strides = array<i32>} : memref<256x256xf32, #tpu.memory_space<vmem>>, vector<256x256xf32>,
    return
  }
  func.func @transform_0(%arg0: i32) -> (i32, i32) {
    %c0_i32 = arith.constant 0 : i32
    %c0_i32_0 = arith.constant 0 : i32
    return %arg0, %c0_i32 : i32, i32
  }
  func.func @transform_1(%arg0: i32) -> (i32, i32) {
    %c0_i32 = arith.constant 0 : i32
    %c0_i32_0 = arith.constant 0 : i32
    %c0_i32_1 = arith.constant 0 : i32
    return %c0_i32, %c0_i32_0 : i32, i32
  }
  func.func @transform_2(%arg0: i32) -> (i32, i32) {
    %c0_i32 = arith.constant 0 : i32
    %c0_i32_0 = arith.constant 0 : i32
    %c0_i32_1 = arith.constant 0 : i32
    return %c0_i32, %c0_i32_0 : i32, i32
  }
  func.func @transform_3(%arg0: i32) -> (i32, i32) {
    %c0_i32 = arith.constant 0 : i32
    %c0_i32_0 = arith.constant 0 : i32
    %c0_i32_1 = arith.constant 0 : i32
    return %c0_i32, %c0_i32_0 : i32, i32
  }
  func.func @transform_4(%arg0: i32) -> (i32, i32) {
    %c0_i32 = arith.constant 0 : i32
    %c0_i32_0 = arith.constant 0 : i32
    return %c0_i32, %arg0 : i32, i32
  }
  func.func @transform_5(%arg0: i32) -> (i32, i32) {
    %c0_i32 = arith.constant 0 : i32
    %c0_i32_0 = arith.constant 0 : i32
    return %c0_i32, %arg0 : i32, i32
  }
}

</mosaic_0001>

<llo_original>
// kernel: tpu_custom_call.1
$region0: #{tpu_custom_call.1}
  #allocation0 [shape = 'u32[]', space=smem, size = 0x4, offset = 0x4, fixed_abs, tag = 'smem constant byte address 0x4 - core index']
  #allocation1 [shape = 'u32[144,128]{1,0:T(1,128)}', space=vmem, size = 0x12000, scoped, tag = 'internal scratch']
  %s0 = inlined_call_operand.vmem [shape: f32[256,32], index: 0, kind: input, shape index: {}]
  %s1 = inlined_call_operand.vmem [shape: f32[32,256], index: 1, kind: input, shape index: {}]
  %s2 = inlined_call_operand.vmem [shape: f32[32,256], index: 2, kind: input, shape index: {}]
  %s3 = inlined_call_operand.vmem [shape: f32[256,1], index: 3, kind: input, shape index: {}]
  %s4 = inlined_call_operand.vmem [shape: f32[1,256], index: 4, kind: input, shape index: {}]
  %s5 = inlined_call_operand.hbm [shape: f32[256,256], index: 5, kind: output, shape index: {}]
  %s6 = sld [smem:[#allocation0]]
  $region30: #{tpu_custom_call.1} parent=0
    _
  %s8 = ssub.s32 1, %s6
  %s9 = scalar_select 0, %s8, %s6
  $region1: #{tpu_custom_call.1} parent=0
    #allocation2 [shape = 'u8[262144]{0}', space=vmem, size = 0x40000, scoped, tag = 'output window, operand 0, single buffered']
    #allocation3 [shape = 's32[1]{0}', space=sflag, size = 0x4, scoped, tag = 'scoped memory for tpu_custom_call.1']
    %10 = vsyncpa [#allocation3], 0
    // Predicated region
    $region2: #{tpu_custom_call.1} parent=1 // pred_check
      _
    $region3: #{tpu_custom_call.1} parent=1 // pred_check_branch
      %12 = sbr.rel (0) target = $region5
    $region4: #{tpu_custom_call.1} parent=1 // pred_region
      _
    $region5: #{tpu_custom_call.1} parent=1 // pred_fallthru
      _
    // Predicated region
    $region6: #{tpu_custom_call.1} parent=1 // pred_check
      _
    $region7: #{tpu_custom_call.1} parent=1 // pred_check_branch
      %14 = sbr.rel (0) target = $region9
    $region8: #{tpu_custom_call.1} parent=1 // pred_region
      _
    $region9: #{tpu_custom_call.1} parent=1 // pred_fallthru
      _
    // Predicated region
    $region10: #{tpu_custom_call.1} parent=1 // pred_check
      _
    $region11: #{tpu_custom_call.1} parent=1 // pred_check_branch
      %16 = sbr.rel (0) target = $region13
    $region12: #{tpu_custom_call.1} parent=1 // pred_region
      _
    $region13: #{tpu_custom_call.1} parent=1 // pred_fallthru
      _
    // Predicated region
    $region14: #{tpu_custom_call.1} parent=1 // pred_check
      _
    $region15: #{tpu_custom_call.1} parent=1 // pred_check_branch
      %18 = sbr.rel (0) target = $region17
    $region16: #{tpu_custom_call.1} parent=1 // pred_region
      _
    $region17: #{tpu_custom_call.1} parent=1 // pred_fallthru
      _
    // Predicated region
    $region18: #{tpu_custom_call.1} parent=1 // pred_check
      _
    $region19: #{tpu_custom_call.1} parent=1 // pred_check_branch
      %20 = sbr.rel (0) target = $region21
    $region20: #{tpu_custom_call.1} parent=1 // pred_region
      _
    $region21: #{tpu_custom_call.1} parent=1 // pred_fallthru
      _
    %v21 = vld [vmem:[%s0] sm:$0xff]
    %v22 = vld [vmem:[%s0 + $0x8] sm:$0xff]
    %v23 = vld [vmem:[%s0 + $0x10] sm:$0xff]
    %v24 = vld [vmem:[%s0 + $0x18] sm:$0xff]
    %v25 = vld [vmem:[%s0 + $0x20] sm:$0xff]
    %v26 = vld [vmem:[%s0 + $0x28] sm:$0xff]
    %v27 = vld [vmem:[%s0 + $0x30] sm:$0xff]
    %v28 = vld [vmem:[%s0 + $0x38] sm:$0xff]
    %v29 = vld [vmem:[%s0 + $0x40] sm:$0xff]
    %v30 = vld [vmem:[%s0 + $0x48] sm:$0xff]
    %v31 = vld [vmem:[%s0 + $0x50] sm:$0xff]
    %v32 = vld [vmem:[%s0 + $0x58] sm:$0xff]
    %v33 = vld [vmem:[%s0 + $0x60] sm:$0xff]
    %v34 = vld [vmem:[%s0 + $0x68] sm:$0xff]
    %v35 = vld [vmem:[%s0 + $0x70] sm:$0xff]
    %v36 = vld [vmem:[%s0 + $0x78] sm:$0xff]
    %v37 = vld [vmem:[%s0 + $0x80] sm:$0xff]
    %v38 = vld [vmem:[%s0 + $0x88] sm:$0xff]
    %v39 = vld [vmem:[%s0 + $0x90] sm:$0xff]
    %v40 = vld [vmem:[%s0 + $0x98] sm:$0xff]
    %v41 = vld [vmem:[%s0 + $0xa0] sm:$0xff]
    %v42 = vld [vmem:[%s0 + $0xa8] sm:$0xff]
    %v43 = vld [vmem:[%s0 + $0xb0] sm:$0xff]
    %v44 = vld [vmem:[%s0 + $0xb8] sm:$0xff]
    %v45 = vld [vmem:[%s0 + $0xc0] sm:$0xff]
    %v46 = vld [vmem:[%s0 + $0xc8] sm:$0xff]
    %v47 = vld [vmem:[%s0 + $0xd0] sm:$0xff]
    %v48 = vld [vmem:[%s0 + $0xd8] sm:$0xff]
    %v49 = vld [vmem:[%s0 + $0xe0] sm:$0xff]
    %v50 = vld [vmem:[%s0 + $0xe8] sm:$0xff]
    %v51 = vld [vmem:[%s0 + $0xf0] sm:$0xff]
    %v52 = vld [vmem:[%s0 + $0xf8] sm:$0xff]
    %v53 = vmul.f32 %v21, %v21
    %v54 = vmul.f32 %v22, %v22
    %v55 = vmul.f32 %v23, %v23
    %v56 = vmul.f32 %v24, %v24
    %v57 = vmul.f32 %v25, %v25
    %v58 = vmul.f32 %v26, %v26
    %v59 = vmul.f32 %v27, %v27
    %v60 = vmul.f32 %v28, %v28
    %v61 = vmul.f32 %v29, %v29
    %v62 = vmul.f32 %v30, %v30
    %v63 = vmul.f32 %v31, %v31
    %v64 = vmul.f32 %v32, %v32
    %v65 = vmul.f32 %v33, %v33
    %v66 = vmul.f32 %v34, %v34
    %v67 = vmul.f32 %v35, %v35
    %v68 = vmul.f32 %v36, %v36
    %v69 = vmul.f32 %v37, %v37
    %v70 = vmul.f32 %v38, %v38
    %v71 = vmul.f32 %v39, %v39
    %v72 = vmul.f32 %v40, %v40
    %v73 = vmul.f32 %v41, %v41
    %v74 = vmul.f32 %v42, %v42
    %v75 = vmul.f32 %v43, %v43
    %v76 = vmul.f32 %v44, %v44
    %v77 = vmul.f32 %v45, %v45
    %v78 = vmul.f32 %v46, %v46
    %v79 = vmul.f32 %v47, %v47
    %v80 = vmul.f32 %v48, %v48
    %v81 = vmul.f32 %v49, %v49
    %v82 = vmul.f32 %v50, %v50
    %v83 = vmul.f32 %v51, %v51
    %v84 = vmul.f32 %v52, %v52
    %v85 = vld [vmem:[%s1] sm:$0xff]
    %v86 = vld [vmem:[%s1 + $0x8] sm:$0xff]
    %v87 = vld [vmem:[%s1 + $0x10] sm:$0xff]
    %v88 = vld [vmem:[%s1 + $0x18] sm:$0xff]
    %v89 = vld [vmem:[%s1 + $0x20] sm:$0xff]
    %v90 = vld [vmem:[%s1 + $0x28] sm:$0xff]
    %v91 = vld [vmem:[%s1 + $0x30] sm:$0xff]
    %v92 = vld [vmem:[%s1 + $0x38] sm:$0xff]
    %v93 = vld [vmem:[%s2] sm:$0xff]
    %v94 = vld [vmem:[%s2 + $0x8] sm:$0xff]
    %v95 = vld [vmem:[%s2 + $0x10] sm:$0xff]
    %v96 = vld [vmem:[%s2 + $0x18] sm:$0xff]
    %v97 = vld [vmem:[%s2 + $0x20] sm:$0xff]
    %v98 = vld [vmem:[%s2 + $0x28] sm:$0xff]
    %v99 = vld [vmem:[%s2 + $0x30] sm:$0xff]
    %v100 = vld [vmem:[%s2 + $0x38] sm:$0xff]
    %vm101 = vcmask 261120
    %v103 = vsel %vm101, %v21, 0
    %v106 = vsel %vm101, %v22, 0
    %v109 = vsel %vm101, %v23, 0
    %v112 = vsel %vm101, %v24, 0
    %v115 = vsel %vm101, %v25, 0
    %v118 = vsel %vm101, %v26, 0
    %v121 = vsel %vm101, %v27, 0
    %v124 = vsel %vm101, %v28, 0
    %v127 = vsel %vm101, %v29, 0
    %v130 = vsel %vm101, %v30, 0
    %v133 = vsel %vm101, %v31, 0
    %v136 = vsel %vm101, %v32, 0
    %v139 = vsel %vm101, %v33, 0
    %v142 = vsel %vm101, %v34, 0
    %v145 = vsel %vm101, %v35, 0
    %v148 = vsel %vm101, %v36, 0
    %v151 = vsel %vm101, %v37, 0
    %v154 = vsel %vm101, %v38, 0
    %v157 = vsel %vm101, %v39, 0
    %v160 = vsel %vm101, %v40, 0
    %v163 = vsel %vm101, %v41, 0
    %v166 = vsel %vm101, %v42, 0
    %v169 = vsel %vm101, %v43, 0
    %v172 = vsel %vm101, %v44, 0
    %v175 = vsel %vm101, %v45, 0
    %v178 = vsel %vm101, %v46, 0
    %v181 = vsel %vm101, %v47, 0
    %v184 = vsel %vm101, %v48, 0
    %v187 = vsel %vm101, %v49, 0
    %v190 = vsel %vm101, %v50, 0
    %v193 = vsel %vm101, %v51, 0
    %v196 = vsel %vm101, %v52, 0
    %198 = vmatprep.subr.mxu0 0.0
    %199 = vmatpush1.msra.mxu0 0.0
    %200 = vmatprep.subr.mxu0 0.0
    %201 = vmatpush1.msra.mxu0 0.0
    %202 = vmatprep.subr.mxu0 0.0
    %203 = vmatpush1.msra.mxu0 0.0
    %204 = vmatprep.subr.mxu0 0.0
    %205 = vmatpush1.msra.mxu0 0.0
    %206 = vmatprep.subr.mxu0 0.0
    %207 = vmatpush1.msra.mxu0 0.0
    %208 = vmatprep.subr.mxu0 0.0
    %209 = vmatpush1.msra.mxu0 0.0
    %210 = vmatprep.subr.mxu0 0.0
    %211 = vmatpush1.msra.mxu0 0.0
    %212 = vmatprep.subr.mxu0 0.0
    %213 = vmatpush1.msra.mxu0 0.0
    %214 = vmatprep.subr.mxu0 0.0
    %215 = vmatpush1.msra.mxu0 0.0
    %216 = vmatprep.subr.mxu0 0.0
    %217 = vmatpush1.msra.mxu0 0.0
    %218 = vmatprep.subr.mxu0 0.0
    %219 = vmatpush1.msra.mxu0 0.0
    %220 = vmatprep.subr.mxu0 0.0
    %221 = vmatpush1.msra.mxu0 0.0
    %222 = vmatprep.subr.mxu0 %v100
    %223 = vmatpush1.msra.mxu0 %v99
    %224 = vmatprep.subr.mxu0 %v98
    %225 = vmatpush1.msra.mxu0 %v97
    %226 = vmatprep.subr.mxu0 %v96
    %227 = vmatpush1.msra.mxu0 %v95
    %228 = vmatprep.subr.mxu0 %v94
    %229 = vmatpush1.msra.mxu0 %v93
    %230 = vmatprep.subr.mxu0 0.0
    %231 = vmatpush2.msra.mxu0 0.0
    %232 = vmatprep.subr.mxu0 0.0
    %233 = vmatpush2.msra.mxu0 0.0
    %234 = vmatprep.subr.mxu0 0.0
    %235 = vmatpush2.msra.mxu0 0.0
    %236 = vmatprep.subr.mxu0 0.0
    %237 = vmatpush2.msra.mxu0 0.0
    %238 = vmatprep.subr.mxu0 0.0
    %239 = vmatpush2.msra.mxu0 0.0
    %240 = vmatprep.subr.mxu0 0.0
    %241 = vmatpush2.msra.mxu0 0.0
    %242 = vmatprep.subr.mxu0 0.0
    %243 = vmatpush2.msra.mxu0 0.0
    %244 = vmatprep.subr.mxu0 0.0
    %245 = vmatpush2.msra.mxu0 0.0
    %246 = vmatprep.subr.mxu0 0.0
    %247 = vmatpush2.msra.mxu0 0.0
    %248 = vmatprep.subr.mxu0 0.0
    %249 = vmatpush2.msra.mxu0 0.0
    %250 = vmatprep.subr.mxu0 0.0
    %251 = vmatpush2.msra.mxu0 0.0
    %252 = vmatprep.subr.mxu0 0.0
    %253 = vmatpush2.msra.mxu0 0.0
    %254 = vmatprep.subr.mxu0 0.0
    %255 = vmatpush2.msra.mxu0 0.0
    %256 = vmatprep.subr.mxu0 0.0
    %257 = vmatpush2.msra.mxu0 0.0
    %258 = vmatprep.subr.mxu0 0.0
    %259 = vmatpush2.msra.mxu0 0.0
    %260 = vmatprep.subr.mxu0 0.0
    %261 = vmatpush2.msra.mxu0 0.0
    %262 = vmatprep.mubr.f32.mxu0 0.0
    %263 = vmatmul.mubr.f32.gmra.mxu0 %v103
    %v264 = vpop.f32.mrf.mxu0
    %v265 = vadd.f32 0.0, %v264
    %v266 = vpop.f32.mrf.mxu0
    %v267 = vadd.f32 0.0, %v266
    %268 = vmatprep.mubr.f32.mxu0 0.0
    %269 = vmatmul.mubr.f32.gmra.mxu0 %v106
    %v270 = vpop.f32.mrf.mxu0
    %v271 = vadd.f32 0.0, %v270
    %v272 = vpop.f32.mrf.mxu0
    %v273 = vadd.f32 0.0, %v272
    %274 = vmatprep.mubr.f32.mxu0 0.0
    %275 = vmatmul.mubr.f32.gmra.mxu0 %v109
    %v276 = vpop.f32.mrf.mxu0
    %v277 = vadd.f32 0.0, %v276
    %v278 = vpop.f32.mrf.mxu0
    %v279 = vadd.f32 0.0, %v278
    %280 = vmatprep.mubr.f32.mxu0 0.0
    %281 = vmatmul.mubr.f32.gmra.mxu0 %v112
    %v282 = vpop.f32.mrf.mxu0
    %v283 = vadd.f32 0.0, %v282
    %v284 = vpop.f32.mrf.mxu0
    %v285 = vadd.f32 0.0, %v284
    %286 = vmatprep.mubr.f32.mxu0 0.0
    %287 = vmatmul.mubr.f32.gmra.mxu0 %v115
    %v288 = vpop.f32.mrf.mxu0
    %v289 = vadd.f32 0.0, %v288
    %v290 = vpop.f32.mrf.mxu0
    %v291 = vadd.f32 0.0, %v290
    %292 = vmatprep.mubr.f32.mxu0 0.0
    %293 = vmatmul.mubr.f32.gmra.mxu0 %v118
    %v294 = vpop.f32.mrf.mxu0
    %v295 = vadd.f32 0.0, %v294
    %v296 = vpop.f32.mrf.mxu0
    %v297 = vadd.f32 0.0, %v296
    %298 = vmatprep.mubr.f32.mxu0 0.0
    %299 = vmatmul.mubr.f32.gmra.mxu0 %v121
    %v300 = vpop.f32.mrf.mxu0
    %v301 = vadd.f32 0.0, %v300
    %v302 = vpop.f32.mrf.mxu0
    %v303 = vadd.f32 0.0, %v302
    %304 = vmatprep.mubr.f32.mxu0 0.0
    %305 = vmatmul.mubr.f32.gmra.mxu0 %v124
    %v306 = vpop.f32.mrf.mxu0
    %v307 = vadd.f32 0.0, %v306
    %v308 = vpop.f32.mrf.mxu0
    %v309 = vadd.f32 0.0, %v308
    %310 = vmatprep.mubr.f32.mxu0 0.0
    %311 = vmatmul.mubr.f32.gmra.mxu0 %v127
    %v312 = vpop.f32.mrf.mxu0
    %v313 = vadd.f32 0.0, %v312
    %v314 = vpop.f32.mrf.mxu0
    %v315 = vadd.f32 0.0, %v314
    %316 = vmatprep.mubr.f32.mxu0 0.0
    %317 = vmatmul.mubr.f32.gmra.mxu0 %v130
    %v318 = vpop.f32.mrf.mxu0
    %v319 = vadd.f32 0.0, %v318
    %v320 = vpop.f32.mrf.mxu0
    %v321 = vadd.f32 0.0, %v320
    %322 = vmatprep.mubr.f32.mxu0 0.0
    %323 = vmatmul.mubr.f32.gmra.mxu0 %v133
    %v324 = vpop.f32.mrf.mxu0
    %v325 = vadd.f32 0.0, %v324
    %v326 = vpop.f32.mrf.mxu0
    %v327 = vadd.f32 0.0, %v326
    %328 = vmatprep.mubr.f32.mxu0 0.0
    %329 = vmatmul.mubr.f32.gmra.mxu0 %v136
    %v330 = vpop.f32.mrf.mxu0
    %v331 = vadd.f32 0.0, %v330
    %v332 = vpop.f32.mrf.mxu0
    %v333 = vadd.f32 0.0, %v332
    %334 = vmatprep.mubr.f32.mxu0 0.0
    %335 = vmatmul.mubr.f32.gmra.mxu0 %v139
    %v336 = vpop.f32.mrf.mxu0
    %v337 = vadd.f32 0.0, %v336
    %v338 = vpop.f32.mrf.mxu0
    %v339 = vadd.f32 0.0, %v338
    %340 = vmatprep.mubr.f32.mxu0 0.0
    %341 = vmatmul.mubr.f32.gmra.mxu0 %v142
    %v342 = vpop.f32.mrf.mxu0
    %v343 = vadd.f32 0.0, %v342
    %v344 = vpop.f32.mrf.mxu0
    %v345 = vadd.f32 0.0, %v344
    %346 = vmatprep.mubr.f32.mxu0 0.0
    %347 = vmatmul.mubr.f32.gmra.mxu0 %v145
    %v348 = vpop.f32.mrf.mxu0
    %v349 = vadd.f32 0.0, %v348
    %v350 = vpop.f32.mrf.mxu0
    %v351 = vadd.f32 0.0, %v350
    %352 = vmatprep.mubr.f32.mxu0 0.0
    %353 = vmatmul.mubr.f32.gmra.mxu0 %v148
    %v354 = vpop.f32.mrf.mxu0
    %v355 = vadd.f32 0.0, %v354
    %v356 = vpop.f32.mrf.mxu0
    %v357 = vadd.f32 0.0, %v356
    %358 = vmatprep.mubr.f32.mxu0 0.0
    %359 = vmatmul.mubr.f32.gmra.mxu0 %v151
    %v360 = vpop.f32.mrf.mxu0
    %v361 = vadd.f32 0.0, %v360
    %v362 = vpop.f32.mrf.mxu0
    %v363 = vadd.f32 0.0, %v362
    %364 = vmatprep.mubr.f32.mxu0 0.0
    %365 = vmatmul.mubr.f32.gmra.mxu0 %v154
    %v366 = vpop.f32.mrf.mxu0
    %v367 = vadd.f32 0.0, %v366
    %v368 = vpop.f32.mrf.mxu0
    %v369 = vadd.f32 0.0, %v368
    %370 = vmatprep.mubr.f32.mxu0 0.0
    %371 = vmatmul.mubr.f32.gmra.mxu0 %v157
    %v372 = vpop.f32.mrf.mxu0
    %v373 = vadd.f32 0.0, %v372
    %v374 = vpop.f32.mrf.mxu0
    %v375 = vadd.f32 0.0, %v374
    %376 = vmatprep.mubr.f32.mxu0 0.0
    %377 = vmatmul.mubr.f32.gmra.mxu0 %v160
    %v378 = vpop.f32.mrf.mxu0
    %v379 = vadd.f32 0.0, %v378
    %v380 = vpop.f32.mrf.mxu0
    %v381 = vadd.f32 0.0, %v380
    %382 = vmatprep.mubr.f32.mxu0 0.0
    %383 = vmatmul.mubr.f32.gmra.mxu0 %v163
    %v384 = vpop.f32.mrf.mxu0
    %v385 = vadd.f32 0.0, %v384
    %v386 = vpop.f32.mrf.mxu0
    %v387 = vadd.f32 0.0, %v386
    %388 = vmatprep.mubr.f32.mxu0 0.0
    %389 = vmatmul.mubr.f32.gmra.mxu0 %v166
    %v390 = vpop.f32.mrf.mxu0
    %v391 = vadd.f32 0.0, %v390
    %v392 = vpop.f32.mrf.mxu0
    %v393 = vadd.f32 0.0, %v392
    %394 = vmatprep.mubr.f32.mxu0 0.0
    %395 = vmatmul.mubr.f32.gmra.mxu0 %v169
    %v396 = vpop.f32.mrf.mxu0
    %v397 = vadd.f32 0.0, %v396
    %v398 = vpop.f32.mrf.mxu0
    %v399 = vadd.f32 0.0, %v398
    %400 = vmatprep.mubr.f32.mxu0 0.0
    %401 = vmatmul.mubr.f32.gmra.mxu0 %v172
    %v402 = vpop.f32.mrf.mxu0
    %v403 = vadd.f32 0.0, %v402
    %v404 = vpop.f32.mrf.mxu0
    %v405 = vadd.f32 0.0, %v404
    %406 = vmatprep.mubr.f32.mxu0 0.0
    %407 = vmatmul.mubr.f32.gmra.mxu0 %v175
    %v408 = vpop.f32.mrf.mxu0
    %v409 = vadd.f32 0.0, %v408
    %v410 = vpop.f32.mrf.mxu0
    %v411 = vadd.f32 0.0, %v410
    %412 = vmatprep.mubr.f32.mxu0 0.0
    %413 = vmatmul.mubr.f32.gmra.mxu0 %v178
    %v414 = vpop.f32.mrf.mxu0
    %v415 = vadd.f32 0.0, %v414
    %v416 = vpop.f32.mrf.mxu0
    %v417 = vadd.f32 0.0, %v416
    %418 = vmatprep.mubr.f32.mxu0 0.0
    %419 = vmatmul.mubr.f32.gmra.mxu0 %v181
    %v420 = vpop.f32.mrf.mxu0
    %v421 = vadd.f32 0.0, %v420
    %v422 = vpop.f32.mrf.mxu0
    %v423 = vadd.f32 0.0, %v422
    %424 = vmatprep.mubr.f32.mxu0 0.0
    %425 = vmatmul.mubr.f32.gmra.mxu0 %v184
    %v426 = vpop.f32.mrf.mxu0
    %v427 = vadd.f32 0.0, %v426
    %v428 = vpop.f32.mrf.mxu0
    %v429 = vadd.f32 0.0, %v428
    %430 = vmatprep.mubr.f32.mxu0 0.0
    %431 = vmatmul.mubr.f32.gmra.mxu0 %v187
    %v432 = vpop.f32.mrf.mxu0
    %v433 = vadd.f32 0.0, %v432
    %v434 = vpop.f32.mrf.mxu0
    %v435 = vadd.f32 0.0, %v434
    %436 = vmatprep.mubr.f32.mxu0 0.0
    %437 = vmatmul.mubr.f32.gmra.mxu0 %v190
    %v438 = vpop.f32.mrf.mxu0
    %v439 = vadd.f32 0.0, %v438
    %v440 = vpop.f32.mrf.mxu0
    %v441 = vadd.f32 0.0, %v440
    %442 = vmatprep.mubr.f32.mxu0 0.0
    %443 = vmatmul.mubr.f32.gmra.mxu0 %v193
    %v444 = vpop.f32.mrf.mxu0
    %v445 = vadd.f32 0.0, %v444
    %v446 = vpop.f32.mrf.mxu0
    %v447 = vadd.f32 0.0, %v446
    %448 = vmatprep.mubr.f32.mxu0 0.0
    %449 = vmatmul.mubr.f32.gmra.mxu0 %v196
    %v450 = vpop.f32.mrf.mxu0
    %v451 = vadd.f32 0.0, %v450
    %v452 = vpop.f32.mrf.mxu0
    %v453 = vadd.f32 0.0, %v452
    %454 = vdwg.mxu0
    %v456 = vsel %vm101, %v53, 0
    %v459 = vsel %vm101, %v54, 0
    %v462 = vsel %vm101, %v55, 0
    %v465 = vsel %vm101, %v56, 0
    %v468 = vsel %vm101, %v57, 0
    %v471 = vsel %vm101, %v58, 0
    %v474 = vsel %vm101, %v59, 0
    %v477 = vsel %vm101, %v60, 0
    %v480 = vsel %vm101, %v61, 0
    %v483 = vsel %vm101, %v62, 0
    %v486 = vsel %vm101, %v63, 0
    %v489 = vsel %vm101, %v64, 0
    %v492 = vsel %vm101, %v65, 0
    %v495 = vsel %vm101, %v66, 0
    %v498 = vsel %vm101, %v67, 0
    %v501 = vsel %vm101, %v68, 0
    %v504 = vsel %vm101, %v69, 0
    %v507 = vsel %vm101, %v70, 0
    %v510 = vsel %vm101, %v71, 0
    %v513 = vsel %vm101, %v72, 0
    %v516 = vsel %vm101, %v73, 0
    %v519 = vsel %vm101, %v74, 0
    %v522 = vsel %vm101, %v75, 0
    %v525 = vsel %vm101, %v76, 0
    %v528 = vsel %vm101, %v77, 0
    %v531 = vsel %vm101, %v78, 0
    %v534 = vsel %vm101, %v79, 0
    %v537 = vsel %vm101, %v80, 0
    %v540 = vsel %vm101, %v81, 0
    %v543 = vsel %vm101, %v82, 0
    %v546 = vsel %vm101, %v83, 0
    %v549 = vsel %vm101, %v84, 0
    %551 = vmatprep.subr.mxu0 0.0
    %552 = vmatpush1.msra.mxu0 0.0
    %553 = vmatprep.subr.mxu0 0.0
    %554 = vmatpush1.msra.mxu0 0.0
    %555 = vmatprep.subr.mxu0 0.0
    %556 = vmatpush1.msra.mxu0 0.0
    %557 = vmatprep.subr.mxu0 0.0
    %558 = vmatpush1.msra.mxu0 0.0
    %559 = vmatprep.subr.mxu0 0.0
    %560 = vmatpush1.msra.mxu0 0.0
    %561 = vmatprep.subr.mxu0 0.0
    %562 = vmatpush1.msra.mxu0 0.0
    %563 = vmatprep.subr.mxu0 0.0
    %564 = vmatpush1.msra.mxu0 0.0
    %565 = vmatprep.subr.mxu0 0.0
    %566 = vmatpush1.msra.mxu0 0.0
    %567 = vmatprep.subr.mxu0 0.0
    %568 = vmatpush1.msra.mxu0 0.0
    %569 = vmatprep.subr.mxu0 0.0
    %570 = vmatpush1.msra.mxu0 0.0
    %571 = vmatprep.subr.mxu0 0.0
    %572 = vmatpush1.msra.mxu0 0.0
    %573 = vmatprep.subr.mxu0 0.0
    %574 = vmatpush1.msra.mxu0 0.0
    %575 = vmatprep.subr.mxu0 %v92
    %576 = vmatpush1.msra.mxu0 %v91
    %577 = vmatprep.subr.mxu0 %v90
    %578 = vmatpush1.msra.mxu0 %v89
    %579 = vmatprep.subr.mxu0 %v88
    %580 = vmatpush1.msra.mxu0 %v87
    %581 = vmatprep.subr.mxu0 %v86
    %582 = vmatpush1.msra.mxu0 %v85
    %583 = vmatprep.subr.mxu0 0.0
    %584 = vmatpush2.msra.mxu0 0.0
    %585 = vmatprep.subr.mxu0 0.0
    %586 = vmatpush2.msra.mxu0 0.0
    %587 = vmatprep.subr.mxu0 0.0
    %588 = vmatpush2.msra.mxu0 0.0
    %589 = vmatprep.subr.mxu0 0.0
    %590 = vmatpush2.msra.mxu0 0.0
    %591 = vmatprep.subr.mxu0 0.0
    %592 = vmatpush2.msra.mxu0 0.0
    %593 = vmatprep.subr.mxu0 0.0
    %594 = vmatpush2.msra.mxu0 0.0
    %595 = vmatprep.subr.mxu0 0.0
    %596 = vmatpush2.msra.mxu0 0.0
    %597 = vmatprep.subr.mxu0 0.0
    %598 = vmatpush2.msra.mxu0 0.0
    %599 = vmatprep.subr.mxu0 0.0
    %600 = vmatpush2.msra.mxu0 0.0
    %601 = vmatprep.subr.mxu0 0.0
    %602 = vmatpush2.msra.mxu0 0.0
    %603 = vmatprep.subr.mxu0 0.0
    %604 = vmatpush2.msra.mxu0 0.0
    %605 = vmatprep.subr.mxu0 0.0
    %606 = vmatpush2.msra.mxu0 0.0
    %607 = vmatprep.subr.mxu0 0.0
    %608 = vmatpush2.msra.mxu0 0.0
    %609 = vmatprep.subr.mxu0 0.0
    %610 = vmatpush2.msra.mxu0 0.0
    %611 = vmatprep.subr.mxu0 0.0
    %612 = vmatpush2.msra.mxu0 0.0
    %613 = vmatprep.subr.mxu0 0.0
    %614 = vmatpush2.msra.mxu0 0.0
    %615 = vmatprep.mubr.f32.mxu0 0.0
    %616 = vmatmul.mubr.f32.gmra.mxu0 %v456
    %v617 = vpop.f32.mrf.mxu0
    %v618 = vadd.f32 %v265, %v617
    %v619 = vpop.f32.mrf.mxu0
    %v620 = vadd.f32 %v267, %v619
    %621 = vmatprep.mubr.f32.mxu0 0.0
    %622 = vmatmul.mubr.f32.gmra.mxu0 %v459
    %v623 = vpop.f32.mrf.mxu0
    %v624 = vadd.f32 %v271, %v623
    %v625 = vpop.f32.mrf.mxu0
    %v626 = vadd.f32 %v273, %v625
    %627 = vmatprep.mubr.f32.mxu0 0.0
    %628 = vmatmul.mubr.f32.gmra.mxu0 %v462
    %v629 = vpop.f32.mrf.mxu0
    %v630 = vadd.f32 %v277, %v629
    %v631 = vpop.f32.mrf.mxu0
    %v632 = vadd.f32 %v279, %v631
    %633 = vmatprep.mubr.f32.mxu0 0.0
    %634 = vmatmul.mubr.f32.gmra.mxu0 %v465
    %v635 = vpop.f32.mrf.mxu0
    %v636 = vadd.f32 %v283, %v635
    %v637 = vpop.f32.mrf.mxu0
    %v638 = vadd.f32 %v285, %v637
    %639 = vmatprep.mubr.f32.mxu0 0.0
    %640 = vmatmul.mubr.f32.gmra.mxu0 %v468
    %v641 = vpop.f32.mrf.mxu0
    %v642 = vadd.f32 %v289, %v641
    %v643 = vpop.f32.mrf.mxu0
    %v644 = vadd.f32 %v291, %v643
    %645 = vmatprep.mubr.f32.mxu0 0.0
    %646 = vmatmul.mubr.f32.gmra.mxu0 %v471
    %v647 = vpop.f32.mrf.mxu0
    %v648 = vadd.f32 %v295, %v647
    %v649 = vpop.f32.mrf.mxu0
    %v650 = vadd.f32 %v297, %v649
    %651 = vmatprep.mubr.f32.mxu0 0.0
    %652 = vmatmul.mubr.f32.gmra.mxu0 %v474
    %v653 = vpop.f32.mrf.mxu0
    %v654 = vadd.f32 %v301, %v653
    %v655 = vpop.f32.mrf.mxu0
    %v656 = vadd.f32 %v303, %v655
    %657 = vmatprep.mubr.f32.mxu0 0.0
    %658 = vmatmul.mubr.f32.gmra.mxu0 %v477
    %v659 = vpop.f32.mrf.mxu0
    %v660 = vadd.f32 %v307, %v659
    %v661 = vpop.f32.mrf.mxu0
    %v662 = vadd.f32 %v309, %v661
    %663 = vmatprep.mubr.f32.mxu0 0.0
    %664 = vmatmul.mubr.f32.gmra.mxu0 %v480
    %v665 = vpop.f32.mrf.mxu0
    %v666 = vadd.f32 %v313, %v665
    %v667 = vpop.f32.mrf.mxu0
    %v668 = vadd.f32 %v315, %v667
    %669 = vmatprep.mubr.f32.mxu0 0.0
    %670 = vmatmul.mubr.f32.gmra.mxu0 %v483
    %v671 = vpop.f32.mrf.mxu0
    %v672 = vadd.f32 %v319, %v671
    %v673 = vpop.f32.mrf.mxu0
    %v674 = vadd.f32 %v321, %v673
    %675 = vmatprep.mubr.f32.mxu0 0.0
    %676 = vmatmul.mubr.f32.gmra.mxu0 %v486
    %v677 = vpop.f32.mrf.mxu0
    %v678 = vadd.f32 %v325, %v677
    %v679 = vpop.f32.mrf.mxu0
    %v680 = vadd.f32 %v327, %v679
    %681 = vmatprep.mubr.f32.mxu0 0.0
    %682 = vmatmul.mubr.f32.gmra.mxu0 %v489
    %v683 = vpop.f32.mrf.mxu0
    %v684 = vadd.f32 %v331, %v683
    %v685 = vpop.f32.mrf.mxu0
    %v686 = vadd.f32 %v333, %v685
    %687 = vmatprep.mubr.f32.mxu0 0.0
    %688 = vmatmul.mubr.f32.gmra.mxu0 %v492
    %v689 = vpop.f32.mrf.mxu0
    %v690 = vadd.f32 %v337, %v689
    %v691 = vpop.f32.mrf.mxu0
    %v692 = vadd.f32 %v339, %v691
    %693 = vmatprep.mubr.f32.mxu0 0.0
    %694 = vmatmul.mubr.f32.gmra.mxu0 %v495
    %v695 = vpop.f32.mrf.mxu0
    %v696 = vadd.f32 %v343, %v695
    %v697 = vpop.f32.mrf.mxu0
    %v698 = vadd.f32 %v345, %v697
    %699 = vmatprep.mubr.f32.mxu0 0.0
    %700 = vmatmul.mubr.f32.gmra.mxu0 %v498
    %v701 = vpop.f32.mrf.mxu0
    %v702 = vadd.f32 %v349, %v701
    %v703 = vpop.f32.mrf.mxu0
    %v704 = vadd.f32 %v351, %v703
    %705 = vmatprep.mubr.f32.mxu0 0.0
    %706 = vmatmul.mubr.f32.gmra.mxu0 %v501
    %v707 = vpop.f32.mrf.mxu0
    %v708 = vadd.f32 %v355, %v707
    %v709 = vpop.f32.mrf.mxu0
    %v710 = vadd.f32 %v357, %v709
    %711 = vmatprep.mubr.f32.mxu0 0.0
    %712 = vmatmul.mubr.f32.gmra.mxu0 %v504
    %v713 = vpop.f32.mrf.mxu0
    %v714 = vadd.f32 %v361, %v713
    %v715 = vpop.f32.mrf.mxu0
    %v716 = vadd.f32 %v363, %v715
    %717 = vmatprep.mubr.f32.mxu0 0.0
    %718 = vmatmul.mubr.f32.gmra.mxu0 %v507
    %v719 = vpop.f32.mrf.mxu0
    %v720 = vadd.f32 %v367, %v719
    %v721 = vpop.f32.mrf.mxu0
    %v722 = vadd.f32 %v369, %v721
    %723 = vmatprep.mubr.f32.mxu0 0.0
    %724 = vmatmul.mubr.f32.gmra.mxu0 %v510
    %v725 = vpop.f32.mrf.mxu0
    %v726 = vadd.f32 %v373, %v725
    %v727 = vpop.f32.mrf.mxu0
    %v728 = vadd.f32 %v375, %v727
    %729 = vmatprep.mubr.f32.mxu0 0.0
    %730 = vmatmul.mubr.f32.gmra.mxu0 %v513
    %v731 = vpop.f32.mrf.mxu0
    %v732 = vadd.f32 %v379, %v731
    %v733 = vpop.f32.mrf.mxu0
    %v734 = vadd.f32 %v381, %v733
    %735 = vmatprep.mubr.f32.mxu0 0.0
    %736 = vmatmul.mubr.f32.gmra.mxu0 %v516
    %v737 = vpop.f32.mrf.mxu0
    %v738 = vadd.f32 %v385, %v737
    %v739 = vpop.f32.mrf.mxu0
    %v740 = vadd.f32 %v387, %v739
    %741 = vmatprep.mubr.f32.mxu0 0.0
    %742 = vmatmul.mubr.f32.gmra.mxu0 %v519
    %v743 = vpop.f32.mrf.mxu0
    %v744 = vadd.f32 %v391, %v743
    %v745 = vpop.f32.mrf.mxu0
    %v746 = vadd.f32 %v393, %v745
    %747 = vmatprep.mubr.f32.mxu0 0.0
    %748 = vmatmul.mubr.f32.gmra.mxu0 %v522
    %v749 = vpop.f32.mrf.mxu0
    %v750 = vadd.f32 %v397, %v749
    %v751 = vpop.f32.mrf.mxu0
    %v752 = vadd.f32 %v399, %v751
    %753 = vmatprep.mubr.f32.mxu0 0.0
    %754 = vmatmul.mubr.f32.gmra.mxu0 %v525
    %v755 = vpop.f32.mrf.mxu0
    %v756 = vadd.f32 %v403, %v755
    %v757 = vpop.f32.mrf.mxu0
    %v758 = vadd.f32 %v405, %v757
    %759 = vmatprep.mubr.f32.mxu0 0.0
    %760 = vmatmul.mubr.f32.gmra.mxu0 %v528
    %v761 = vpop.f32.mrf.mxu0
    %v762 = vadd.f32 %v409, %v761
    %v763 = vpop.f32.mrf.mxu0
    %v764 = vadd.f32 %v411, %v763
    %765 = vmatprep.mubr.f32.mxu0 0.0
    %766 = vmatmul.mubr.f32.gmra.mxu0 %v531
    %v767 = vpop.f32.mrf.mxu0
    %v768 = vadd.f32 %v415, %v767
    %v769 = vpop.f32.mrf.mxu0
    %v770 = vadd.f32 %v417, %v769
    %771 = vmatprep.mubr.f32.mxu0 0.0
    %772 = vmatmul.mubr.f32.gmra.mxu0 %v534
    %v773 = vpop.f32.mrf.mxu0
    %v774 = vadd.f32 %v421, %v773
    %v775 = vpop.f32.mrf.mxu0
    %v776 = vadd.f32 %v423, %v775
    %777 = vmatprep.mubr.f32.mxu0 0.0
    %778 = vmatmul.mubr.f32.gmra.mxu0 %v537
    %v779 = vpop.f32.mrf.mxu0
    %v780 = vadd.f32 %v427, %v779
    %v781 = vpop.f32.mrf.mxu0
    %v782 = vadd.f32 %v429, %v781
    %783 = vmatprep.mubr.f32.mxu0 0.0
    %784 = vmatmul.mubr.f32.gmra.mxu0 %v540
    %v785 = vpop.f32.mrf.mxu0
    %v786 = vadd.f32 %v433, %v785
    %v787 = vpop.f32.mrf.mxu0
    %v788 = vadd.f32 %v435, %v787
    %789 = vmatprep.mubr.f32.mxu0 0.0
    %790 = vmatmul.mubr.f32.gmra.mxu0 %v543
    %v791 = vpop.f32.mrf.mxu0
    %v792 = vadd.f32 %v439, %v791
    %v793 = vpop.f32.mrf.mxu0
    %v794 = vadd.f32 %v441, %v793
    %795 = vmatprep.mubr.f32.mxu0 0.0
    %796 = vmatmul.mubr.f32.gmra.mxu0 %v546
    %v797 = vpop.f32.mrf.mxu0
    %v798 = vadd.f32 %v445, %v797
    %v799 = vpop.f32.mrf.mxu0
    %v800 = vadd.f32 %v447, %v799
    %801 = vmatprep.mubr.f32.mxu0 0.0
    %802 = vmatmul.mubr.f32.gmra.mxu0 %v549
    %v803 = vpop.f32.mrf.mxu0
    %v804 = vadd.f32 %v451, %v803
    %v805 = vpop.f32.mrf.mxu0
    %v806 = vadd.f32 %v453, %v805
    %807 = vdwg.mxu0
    %808 = vxpose.xlu0.b32.start [1/16] %v618, 128
    %809 = vxpose.xlu0.b32.cont [2/16] %v624, 128
    %810 = vxpose.xlu0.b32.cont [3/16] %v630, 128
    %811 = vxpose.xlu0.b32.cont [4/16] %v636, 128
    %812 = vxpose.xlu0.b32.cont [5/16] %v642, 128
    %813 = vxpose.xlu0.b32.cont [6/16] %v648, 128
    %814 = vxpose.xlu0.b32.cont [7/16] %v654, 128
    %815 = vxpose.xlu0.b32.cont [8/16] %v660, 128
    %816 = vxpose.xlu0.b32.cont [9/16] %v666, 128
    %817 = vxpose.xlu0.b32.cont [10/16] %v672, 128
    %818 = vxpose.xlu0.b32.cont [11/16] %v678, 128
    %819 = vxpose.xlu0.b32.cont [12/16] %v684, 128
    %820 = vxpose.xlu0.b32.cont [13/16] %v690, 128
    %821 = vxpose.xlu0.b32.cont [14/16] %v696, 128
    %822 = vxpose.xlu0.b32.cont [15/16] %v702, 128
    %823 = vxpose.xlu0.b32.end [16/16] %v708, 128
    %v824 = vpop.trf.xlu0
    %v825 = vpop.trf.xlu0
    %v826 = vpop.trf.xlu0
    %v827 = vpop.trf.xlu0
    %v828 = vpop.trf.xlu0
    %v829 = vpop.trf.xlu0
    %v830 = vpop.trf.xlu0
    %v831 = vpop.trf.xlu0
    %v832 = vpop.trf.xlu0
    %v833 = vpop.trf.xlu0
    %v834 = vpop.trf.xlu0
    %v835 = vpop.trf.xlu0
    %v836 = vpop.trf.xlu0
    %v837 = vpop.trf.xlu0
    %v838 = vpop.trf.xlu0
    %v839 = vpop.trf.xlu0
    %840 = vxpose.xlu0.b32.start [1/16] %v620, 128
    %841 = vxpose.xlu0.b32.cont [2/16] %v626, 128
    %842 = vxpose.xlu0.b32.cont [3/16] %v632, 128
    %843 = vxpose.xlu0.b32.cont [4/16] %v638, 128
    %844 = vxpose.xlu0.b32.cont [5/16] %v644, 128
    %845 = vxpose.xlu0.b32.cont [6/16] %v650, 128
    %846 = vxpose.xlu0.b32.cont [7/16] %v656, 128
    %847 = vxpose.xlu0.b32.cont [8/16] %v662, 128
    %848 = vxpose.xlu0.b32.cont [9/16] %v668, 128
    %849 = vxpose.xlu0.b32.cont [10/16] %v674, 128
    %850 = vxpose.xlu0.b32.cont [11/16] %v680, 128
    %851 = vxpose.xlu0.b32.cont [12/16] %v686, 128
    %852 = vxpose.xlu0.b32.cont [13/16] %v692, 128
    %853 = vxpose.xlu0.b32.cont [14/16] %v698, 128
    %854 = vxpose.xlu0.b32.cont [15/16] %v704, 128
    %855 = vxpose.xlu0.b32.end [16/16] %v710, 128
    %v856 = vpop.trf.xlu0
    %v857 = vpop.trf.xlu0
    %v858 = vpop.trf.xlu0
    %v859 = vpop.trf.xlu0
    %v860 = vpop.trf.xlu0
    %v861 = vpop.trf.xlu0
    %v862 = vpop.trf.xlu0
    %v863 = vpop.trf.xlu0
    %v864 = vpop.trf.xlu0
    %v865 = vpop.trf.xlu0
    %v866 = vpop.trf.xlu0
    %v867 = vpop.trf.xlu0
    %v868 = vpop.trf.xlu0
    %v869 = vpop.trf.xlu0
    %v870 = vpop.trf.xlu0
    %v871 = vpop.trf.xlu0
    %872 = vxpose.xlu0.b32.start [1/16] %v714, 128
    %873 = vxpose.xlu0.b32.cont [2/16] %v720, 128
    %874 = vxpose.xlu0.b32.cont [3/16] %v726, 128
    %875 = vxpose.xlu0.b32.cont [4/16] %v732, 128
    %876 = vxpose.xlu0.b32.cont [5/16] %v738, 128
    %877 = vxpose.xlu0.b32.cont [6/16] %v744, 128
    %878 = vxpose.xlu0.b32.cont [7/16] %v750, 128
    %879 = vxpose.xlu0.b32.cont [8/16] %v756, 128
    %880 = vxpose.xlu0.b32.cont [9/16] %v762, 128
    %881 = vxpose.xlu0.b32.cont [10/16] %v768, 128
    %882 = vxpose.xlu0.b32.cont [11/16] %v774, 128
    %883 = vxpose.xlu0.b32.cont [12/16] %v780, 128
    %884 = vxpose.xlu0.b32.cont [13/16] %v786, 128
    %885 = vxpose.xlu0.b32.cont [14/16] %v792, 128
    %886 = vxpose.xlu0.b32.cont [15/16] %v798, 128
    %887 = vxpose.xlu0.b32.end [16/16] %v804, 128
    %v888 = vpop.trf.xlu0
    %v889 = vpop.trf.xlu0
    %v890 = vpop.trf.xlu0
    %v891 = vpop.trf.xlu0
    %v892 = vpop.trf.xlu0
    %v893 = vpop.trf.xlu0
    %v894 = vpop.trf.xlu0
    %v895 = vpop.trf.xlu0
    %v896 = vpop.trf.xlu0
    %v897 = vpop.trf.xlu0
    %v898 = vpop.trf.xlu0
    %v899 = vpop.trf.xlu0
    %v900 = vpop.trf.xlu0
    %v901 = vpop.trf.xlu0
    %v902 = vpop.trf.xlu0
    %v903 = vpop.trf.xlu0
    %904 = vxpose.xlu0.b32.start [1/16] %v716, 128
    %905 = vxpose.xlu0.b32.cont [2/16] %v722, 128
    %906 = vxpose.xlu0.b32.cont [3/16] %v728, 128
    %907 = vxpose.xlu0.b32.cont [4/16] %v734, 128
    %908 = vxpose.xlu0.b32.cont [5/16] %v740, 128
    %909 = vxpose.xlu0.b32.cont [6/16] %v746, 128
    %910 = vxpose.xlu0.b32.cont [7/16] %v752, 128
    %911 = vxpose.xlu0.b32.cont [8/16] %v758, 128
    %912 = vxpose.xlu0.b32.cont [9/16] %v764, 128
    %913 = vxpose.xlu0.b32.cont [10/16] %v770, 128
    %914 = vxpose.xlu0.b32.cont [11/16] %v776, 128
    %915 = vxpose.xlu0.b32.cont [12/16] %v782, 128
    %916 = vxpose.xlu0.b32.cont [13/16] %v788, 128
    %917 = vxpose.xlu0.b32.cont [14/16] %v794, 128
    %918 = vxpose.xlu0.b32.cont [15/16] %v800, 128
    %919 = vxpose.xlu0.b32.end [16/16] %v806, 128
    %v920 = vpop.trf.xlu0
    %v921 = vpop.trf.xlu0
    %v922 = vpop.trf.xlu0
    %v923 = vpop.trf.xlu0
    %v924 = vpop.trf.xlu0
    %v925 = vpop.trf.xlu0
    %v926 = vpop.trf.xlu0
    %v927 = vpop.trf.xlu0
    %v928 = vpop.trf.xlu0
    %v929 = vpop.trf.xlu0
    %v930 = vpop.trf.xlu0
    %v931 = vpop.trf.xlu0
    %v932 = vpop.trf.xlu0
    %v933 = vpop.trf.xlu0
    %v934 = vpop.trf.xlu0
    %v935 = vpop.trf.xlu0
    %v936 = vld [vmem:[%s3] sm:$0xff]
    %v937 = vld [vmem:[%s3 + $0x8] sm:$0xff]
    %v938 = vld [vmem:[%s3 + $0x10] sm:$0xff]
    %v939 = vld [vmem:[%s3 + $0x18] sm:$0xff]
    %v940 = vld [vmem:[%s3 + $0x20] sm:$0xff]
    %v941 = vld [vmem:[%s3 + $0x28] sm:$0xff]
    %v942 = vld [vmem:[%s3 + $0x30] sm:$0xff]
    %v943 = vld [vmem:[%s3 + $0x38] sm:$0xff]
    %v944 = vld [vmem:[%s3 + $0x40] sm:$0xff]
    %v945 = vld [vmem:[%s3 + $0x48] sm:$0xff]
    %v946 = vld [vmem:[%s3 + $0x50] sm:$0xff]
    %v947 = vld [vmem:[%s3 + $0x58] sm:$0xff]
    %v948 = vld [vmem:[%s3 + $0x60] sm:$0xff]
    %v949 = vld [vmem:[%s3 + $0x68] sm:$0xff]
    %v950 = vld [vmem:[%s3 + $0x70] sm:$0xff]
    %v951 = vld [vmem:[%s3 + $0x78] sm:$0xff]
    %v952 = vld [vmem:[%s3 + $0x80] sm:$0xff]
    %v953 = vld [vmem:[%s3 + $0x88] sm:$0xff]
    %v954 = vld [vmem:[%s3 + $0x90] sm:$0xff]
    %v955 = vld [vmem:[%s3 + $0x98] sm:$0xff]
    %v956 = vld [vmem:[%s3 + $0xa0] sm:$0xff]
    %v957 = vld [vmem:[%s3 + $0xa8] sm:$0xff]
    %v958 = vld [vmem:[%s3 + $0xb0] sm:$0xff]
    %v959 = vld [vmem:[%s3 + $0xb8] sm:$0xff]
    %v960 = vld [vmem:[%s3 + $0xc0] sm:$0xff]
    %v961 = vld [vmem:[%s3 + $0xc8] sm:$0xff]
    %v962 = vld [vmem:[%s3 + $0xd0] sm:$0xff]
    %v963 = vld [vmem:[%s3 + $0xd8] sm:$0xff]
    %v964 = vld [vmem:[%s3 + $0xe0] sm:$0xff]
    %v965 = vld [vmem:[%s3 + $0xe8] sm:$0xff]
    %v966 = vld [vmem:[%s3 + $0xf0] sm:$0xff]
    %v967 = vld [vmem:[%s3 + $0xf8] sm:$0xff]
    %969 = vset.pattern.permute.xlu0 0
    %970 = vperm.xlu0 %969, %v936
    %v971 = vpop.permute.xlu0 %970
    %974 = vset.pattern.permute.xlu0 0
    %975 = vperm.xlu0 %974, %v937
    %v976 = vpop.permute.xlu0 %975
    %979 = vset.pattern.permute.xlu0 0
    %980 = vperm.xlu0 %979, %v938
    %v981 = vpop.permute.xlu0 %980
    %984 = vset.pattern.permute.xlu0 0
    %985 = vperm.xlu0 %984, %v939
    %v986 = vpop.permute.xlu0 %985
    %989 = vset.pattern.permute.xlu0 0
    %990 = vperm.xlu0 %989, %v940
    %v991 = vpop.permute.xlu0 %990
    %994 = vset.pattern.permute.xlu0 0
    %995 = vperm.xlu0 %994, %v941
    %v996 = vpop.permute.xlu0 %995
    %999 = vset.pattern.permute.xlu0 0
    %1000 = vperm.xlu0 %999, %v942
    %v1001 = vpop.permute.xlu0 %1000
    %1004 = vset.pattern.permute.xlu0 0
    %1005 = vperm.xlu0 %1004, %v943
    %v1006 = vpop.permute.xlu0 %1005
    %1009 = vset.pattern.permute.xlu0 0
    %1010 = vperm.xlu0 %1009, %v944
    %v1011 = vpop.permute.xlu0 %1010
    %1014 = vset.pattern.permute.xlu0 0
    %1015 = vperm.xlu0 %1014, %v945
    %v1016 = vpop.permute.xlu0 %1015
    %1019 = vset.pattern.permute.xlu0 0
    %1020 = vperm.xlu0 %1019, %v946
    %v1021 = vpop.permute.xlu0 %1020
    %1024 = vset.pattern.permute.xlu0 0
    %1025 = vperm.xlu0 %1024, %v947
    %v1026 = vpop.permute.xlu0 %1025
    %1029 = vset.pattern.permute.xlu0 0
    %1030 = vperm.xlu0 %1029, %v948
    %v1031 = vpop.permute.xlu0 %1030
    %1034 = vset.pattern.permute.xlu0 0
    %1035 = vperm.xlu0 %1034, %v949
    %v1036 = vpop.permute.xlu0 %1035
    %1039 = vset.pattern.permute.xlu0 0
    %1040 = vperm.xlu0 %1039, %v950
    %v1041 = vpop.permute.xlu0 %1040
    %1044 = vset.pattern.permute.xlu0 0
    %1045 = vperm.xlu0 %1044, %v951
    %v1046 = vpop.permute.xlu0 %1045
    %1049 = vset.pattern.permute.xlu0 0
    %1050 = vperm.xlu0 %1049, %v952
    %v1051 = vpop.permute.xlu0 %1050
    %1054 = vset.pattern.permute.xlu0 0
    %1055 = vperm.xlu0 %1054, %v953
    %v1056 = vpop.permute.xlu0 %1055
    %1059 = vset.pattern.permute.xlu0 0
    %1060 = vperm.xlu0 %1059, %v954
    %v1061 = vpop.permute.xlu0 %1060
    %1064 = vset.pattern.permute.xlu0 0
    %1065 = vperm.xlu0 %1064, %v955
    %v1066 = vpop.permute.xlu0 %1065
    %1069 = vset.pattern.permute.xlu0 0
    %1070 = vperm.xlu0 %1069, %v956
    %v1071 = vpop.permute.xlu0 %1070
    %1074 = vset.pattern.permute.xlu0 0
    %1075 = vperm.xlu0 %1074, %v957
    %v1076 = vpop.permute.xlu0 %1075
    %1079 = vset.pattern.permute.xlu0 0
    %1080 = vperm.xlu0 %1079, %v958
    %v1081 = vpop.permute.xlu0 %1080
    %1084 = vset.pattern.permute.xlu0 0
    %1085 = vperm.xlu0 %1084, %v959
    %v1086 = vpop.permute.xlu0 %1085
    %1089 = vset.pattern.permute.xlu0 0
    %1090 = vperm.xlu0 %1089, %v960
    %v1091 = vpop.permute.xlu0 %1090
    %1094 = vset.pattern.permute.xlu0 0
    %1095 = vperm.xlu0 %1094, %v961
    %v1096 = vpop.permute.xlu0 %1095
    %1099 = vset.pattern.permute.xlu0 0
    %1100 = vperm.xlu0 %1099, %v962
    %v1101 = vpop.permute.xlu0 %1100
    %1104 = vset.pattern.permute.xlu0 0
    %1105 = vperm.xlu0 %1104, %v963
    %v1106 = vpop.permute.xlu0 %1105
    %1109 = vset.pattern.permute.xlu0 0
    %1110 = vperm.xlu0 %1109, %v964
    %v1111 = vpop.permute.xlu0 %1110
    %1114 = vset.pattern.permute.xlu0 0
    %1115 = vperm.xlu0 %1114, %v965
    %v1116 = vpop.permute.xlu0 %1115
    %1119 = vset.pattern.permute.xlu0 0
    %1120 = vperm.xlu0 %1119, %v966
    %v1121 = vpop.permute.xlu0 %1120
    %1124 = vset.pattern.permute.xlu0 0
    %1125 = vperm.xlu0 %1124, %v967
    %v1126 = vpop.permute.xlu0 %1125
    %v1128 = vadd.f32 %v824, %v971
    %v1129 = vadd.f32 %v888, %v971
    %v1130 = vadd.f32 %v825, %v976
    %v1131 = vadd.f32 %v889, %v976
    %v1132 = vadd.f32 %v826, %v981
    %v1133 = vadd.f32 %v890, %v981
    %v1134 = vadd.f32 %v827, %v986
    %v1135 = vadd.f32 %v891, %v986
    %v1136 = vadd.f32 %v828, %v991
    %v1137 = vadd.f32 %v892, %v991
    %v1138 = vadd.f32 %v829, %v996
    %v1139 = vadd.f32 %v893, %v996
    %v1140 = vadd.f32 %v830, %v1001
    %v1141 = vadd.f32 %v894, %v1001
    %v1142 = vadd.f32 %v831, %v1006
    %v1143 = vadd.f32 %v895, %v1006
    %v1144 = vadd.f32 %v832, %v1011
    %v1145 = vadd.f32 %v896, %v1011
    %v1146 = vadd.f32 %v833, %v1016
    %v1147 = vadd.f32 %v897, %v1016
    %v1148 = vadd.f32 %v834, %v1021
    %v1149 = vadd.f32 %v898, %v1021
    %v1150 = vadd.f32 %v835, %v1026
    %v1151 = vadd.f32 %v899, %v1026
    %v1152 = vadd.f32 %v836, %v1031
    %v1153 = vadd.f32 %v900, %v1031
    %v1154 = vadd.f32 %v837, %v1036
    %v1155 = vadd.f32 %v901, %v1036
    %v1156 = vadd.f32 %v838, %v1041
    %v1157 = vadd.f32 %v902, %v1041
    %v1158 = vadd.f32 %v839, %v1046
    %v1159 = vadd.f32 %v903, %v1046
    %v1160 = vadd.f32 %v856, %v1051
    %v1161 = vadd.f32 %v920, %v1051
    %v1162 = vadd.f32 %v857, %v1056
    %v1163 = vadd.f32 %v921, %v1056
    %v1164 = vadd.f32 %v858, %v1061
    %v1165 = vadd.f32 %v922, %v1061
    %v1166 = vadd.f32 %v859, %v1066
    %v1167 = vadd.f32 %v923, %v1066
    %v1168 = vadd.f32 %v860, %v1071
    %v1169 = vadd.f32 %v924, %v1071
    %v1170 = vadd.f32 %v861, %v1076
    %v1171 = vadd.f32 %v925, %v1076
    %v1172 = vadd.f32 %v862, %v1081
    %v1173 = vadd.f32 %v926, %v1081
    %v1174 = vadd.f32 %v863, %v1086
    %v1175 = vadd.f32 %v927, %v1086
    %v1176 = vadd.f32 %v864, %v1091
    %v1177 = vadd.f32 %v928, %v1091
    %v1178 = vadd.f32 %v865, %v1096
    %v1179 = vadd.f32 %v929, %v1096
    %v1180 = vadd.f32 %v866, %v1101
    %v1181 = vadd.f32 %v930, %v1101
    %v1182 = vadd.f32 %v867, %v1106
    %v1183 = vadd.f32 %v931, %v1106
    %v1184 = vadd.f32 %v868, %v1111
    %v1185 = vadd.f32 %v932, %v1111
    %v1186 = vadd.f32 %v869, %v1116
    %v1187 = vadd.f32 %v933, %v1116
    %v1188 = vadd.f32 %v870, %v1121
    %v1189 = vadd.f32 %v934, %v1121
    %v1190 = vadd.f32 %v871, %v1126
    %v1191 = vadd.f32 %v935, %v1126
    %v1192 = vld [vmem:[%s4] sm:$0x3]
    %v1194 = vlaneseq
    %v1195 = vshrl.u32 %v1194, 7
    %v1196 = vsub.s32 0, %v1195
    %v1197 = vrot.slane %v1192, %v1196
    %v1198 = vlaneseq
    %v1199 = vshrl.u32 %v1198, 7
    %v1200 = vsub.s32 1, %v1199
    %v1201 = vrot.slane %v1192, %v1200
    %v1204 = vadd.f32 %v1128, %v1197
    %v1205 = vadd.f32 %v1129, %v1201
    %v1206 = vadd.f32 %v1130, %v1197
    %v1207 = vadd.f32 %v1131, %v1201
    %v1208 = vadd.f32 %v1132, %v1197
    %v1209 = vadd.f32 %v1133, %v1201
    %v1210 = vadd.f32 %v1134, %v1197
    %v1211 = vadd.f32 %v1135, %v1201
    %v1212 = vadd.f32 %v1136, %v1197
    %v1213 = vadd.f32 %v1137, %v1201
    %v1214 = vadd.f32 %v1138, %v1197
    %v1215 = vadd.f32 %v1139, %v1201
    %v1216 = vadd.f32 %v1140, %v1197
    %v1217 = vadd.f32 %v1141, %v1201
    %v1218 = vadd.f32 %v1142, %v1197
    %v1219 = vadd.f32 %v1143, %v1201
    %v1220 = vadd.f32 %v1144, %v1197
    %v1221 = vadd.f32 %v1145, %v1201
    %v1222 = vadd.f32 %v1146, %v1197
    %v1223 = vadd.f32 %v1147, %v1201
    %v1224 = vadd.f32 %v1148, %v1197
    %v1225 = vadd.f32 %v1149, %v1201
    %v1226 = vadd.f32 %v1150, %v1197
    %v1227 = vadd.f32 %v1151, %v1201
    %v1228 = vadd.f32 %v1152, %v1197
    %v1229 = vadd.f32 %v1153, %v1201
    %v1230 = vadd.f32 %v1154, %v1197
    %v1231 = vadd.f32 %v1155, %v1201
    %v1232 = vadd.f32 %v1156, %v1197
    %v1233 = vadd.f32 %v1157, %v1201
    %v1234 = vadd.f32 %v1158, %v1197
    %v1235 = vadd.f32 %v1159, %v1201
    %v1236 = vadd.f32 %v1160, %v1197
    %v1237 = vadd.f32 %v1161, %v1201
    %v1238 = vadd.f32 %v1162, %v1197
    %v1239 = vadd.f32 %v1163, %v1201
    %v1240 = vadd.f32 %v1164, %v1197
    %v1241 = vadd.f32 %v1165, %v1201
    %v1242 = vadd.f32 %v1166, %v1197
    %v1243 = vadd.f32 %v1167, %v1201
    %v1244 = vadd.f32 %v1168, %v1197
    %v1245 = vadd.f32 %v1169, %v1201
    %v1246 = vadd.f32 %v1170, %v1197
    %v1247 = vadd.f32 %v1171, %v1201
    %v1248 = vadd.f32 %v1172, %v1197
    %v1249 = vadd.f32 %v1173, %v1201
    %v1250 = vadd.f32 %v1174, %v1197
    %v1251 = vadd.f32 %v1175, %v1201
    %v1252 = vadd.f32 %v1176, %v1197
    %v1253 = vadd.f32 %v1177, %v1201
    %v1254 = vadd.f32 %v1178, %v1197
    %v1255 = vadd.f32 %v1179, %v1201
    %v1256 = vadd.f32 %v1180, %v1197
    %v1257 = vadd.f32 %v1181, %v1201
    %v1258 = vadd.f32 %v1182, %v1197
    %v1259 = vadd.f32 %v1183, %v1201
    %v1260 = vadd.f32 %v1184, %v1197
    %v1261 = vadd.f32 %v1185, %v1201
    %v1262 = vadd.f32 %v1186, %v1197
    %v1263 = vadd.f32 %v1187, %v1201
    %v1264 = vadd.f32 %v1188, %v1197
    %v1265 = vadd.f32 %v1189, %v1201
    %v1266 = vadd.f32 %v1190, %v1197
    %v1267 = vadd.f32 %v1191, %v1201
    %v1268 = vmax.f32 %v1204, %v1208
    %v1269 = vmax.f32 %v1206, %v1210
    %v1270 = vmax.f32 %v1268, %v1212
    %v1271 = vmax.f32 %v1269, %v1214
    %v1272 = vmax.f32 %v1270, %v1216
    %v1273 = vmax.f32 %v1271, %v1218
    %v1274 = vmax.f32 %v1272, %v1220
    %v1275 = vmax.f32 %v1273, %v1222
    %v1276 = vmax.f32 %v1274, %v1224
    %v1277 = vmax.f32 %v1275, %v1226
    %v1278 = vmax.f32 %v1276, %v1228
    %v1279 = vmax.f32 %v1277, %v1230
    %v1280 = vmax.f32 %v1278, %v1232
    %v1281 = vmax.f32 %v1279, %v1234
    %v1282 = vmax.f32 %v1280, %v1236
    %v1283 = vmax.f32 %v1281, %v1238
    %v1284 = vmax.f32 %v1282, %v1240
    %v1285 = vmax.f32 %v1283, %v1242
    %v1286 = vmax.f32 %v1284, %v1244
    %v1287 = vmax.f32 %v1285, %v1246
    %v1288 = vmax.f32 %v1286, %v1248
    %v1289 = vmax.f32 %v1287, %v1250
    %v1290 = vmax.f32 %v1288, %v1252
    %v1291 = vmax.f32 %v1289, %v1254
    %v1292 = vmax.f32 %v1290, %v1256
    %v1293 = vmax.f32 %v1291, %v1258
    %v1294 = vmax.f32 %v1292, %v1260
    %v1295 = vmax.f32 %v1293, %v1262
    %v1296 = vmax.f32 %v1294, %v1264
    %v1297 = vmax.f32 %v1295, %v1266
    %v1298 = vmax.f32 %v1296, %v1297
    %v1299 = vrot.slane %v1298, 4
    %v1300 = vmax.f32 %v1298, %v1299
    %v1301 = vrot.slane %v1300, 2
    %v1302 = vmax.f32 %v1300, %v1301
    %v1303 = vrot.slane %v1302, 1
    %v1304 = vmax.f32 %v1302, %v1303
    %v1305 = vmax.f32 %v1205, %v1209
    %v1306 = vmax.f32 %v1207, %v1211
    %v1307 = vmax.f32 %v1305, %v1213
    %v1308 = vmax.f32 %v1306, %v1215
    %v1309 = vmax.f32 %v1307, %v1217
    %v1310 = vmax.f32 %v1308, %v1219
    %v1311 = vmax.f32 %v1309, %v1221
    %v1312 = vmax.f32 %v1310, %v1223
    %v1313 = vmax.f32 %v1311, %v1225
    %v1314 = vmax.f32 %v1312, %v1227
    %v1315 = vmax.f32 %v1313, %v1229
    %v1316 = vmax.f32 %v1314, %v1231
    %v1317 = vmax.f32 %v1315, %v1233
    %v1318 = vmax.f32 %v1316, %v1235
    %v1319 = vmax.f32 %v1317, %v1237
    %v1320 = vmax.f32 %v1318, %v1239
    %v1321 = vmax.f32 %v1319, %v1241
    %v1322 = vmax.f32 %v1320, %v1243
    %v1323 = vmax.f32 %v1321, %v1245
    %v1324 = vmax.f32 %v1322, %v1247
    %v1325 = vmax.f32 %v1323, %v1249
    %v1326 = vmax.f32 %v1324, %v1251
    %v1327 = vmax.f32 %v1325, %v1253
    %v1328 = vmax.f32 %v1326, %v1255
    %v1329 = vmax.f32 %v1327, %v1257
    %v1330 = vmax.f32 %v1328, %v1259
    %v1331 = vmax.f32 %v1329, %v1261
    %v1332 = vmax.f32 %v1330, %v1263
    %v1333 = vmax.f32 %v1331, %v1265
    %v1334 = vmax.f32 %v1332, %v1267
    %v1335 = vmax.f32 %v1333, %v1334
    %v1336 = vrot.slane %v1335, 4
    %v1337 = vmax.f32 %v1335, %v1336
    %v1338 = vrot.slane %v1337, 2
    %v1339 = vmax.f32 %v1337, %v1338
    %v1340 = vrot.slane %v1339, 1
    %v1341 = vmax.f32 %v1339, %v1340
    %v1342 = vsub.f32 %v1204, %v1304
    %v1343 = vsub.f32 %v1205, %v1341
    %v1344 = vsub.f32 %v1206, %v1304
    %v1345 = vsub.f32 %v1207, %v1341
    %v1346 = vsub.f32 %v1208, %v1304
    %v1347 = vsub.f32 %v1209, %v1341
    %v1348 = vsub.f32 %v1210, %v1304
    %v1349 = vsub.f32 %v1211, %v1341
    %v1350 = vsub.f32 %v1212, %v1304
    %v1351 = vsub.f32 %v1213, %v1341
    %v1352 = vsub.f32 %v1214, %v1304
    %v1353 = vsub.f32 %v1215, %v1341
    %v1354 = vsub.f32 %v1216, %v1304
    %v1355 = vsub.f32 %v1217, %v1341
    %v1356 = vsub.f32 %v1218, %v1304
    %v1357 = vsub.f32 %v1219, %v1341
    %v1358 = vsub.f32 %v1220, %v1304
    %v1359 = vsub.f32 %v1221, %v1341
    %v1360 = vsub.f32 %v1222, %v1304
    %v1361 = vsub.f32 %v1223, %v1341
    %v1362 = vsub.f32 %v1224, %v1304
    %v1363 = vsub.f32 %v1225, %v1341
    %v1364 = vsub.f32 %v1226, %v1304
    %v1365 = vsub.f32 %v1227, %v1341
    %v1366 = vsub.f32 %v1228, %v1304
    %v1367 = vsub.f32 %v1229, %v1341
    %v1368 = vsub.f32 %v1230, %v1304
    %v1369 = vsub.f32 %v1231, %v1341
    %v1370 = vsub.f32 %v1232, %v1304
    %v1371 = vsub.f32 %v1233, %v1341
    %v1372 = vsub.f32 %v1234, %v1304
    %v1373 = vsub.f32 %v1235, %v1341
    %v1374 = vsub.f32 %v1236, %v1304
    %v1375 = vsub.f32 %v1237, %v1341
    %v1376 = vsub.f32 %v1238, %v1304
    %v1377 = vsub.f32 %v1239, %v1341
    %v1378 = vsub.f32 %v1240, %v1304
    %v1379 = vsub.f32 %v1241, %v1341
    %v1380 = vsub.f32 %v1242, %v1304
    %v1381 = vsub.f32 %v1243, %v1341
    %v1382 = vsub.f32 %v1244, %v1304
    %v1383 = vsub.f32 %v1245, %v1341
    %v1384 = vsub.f32 %v1246, %v1304
    %v1385 = vsub.f32 %v1247, %v1341
    %v1386 = vsub.f32 %v1248, %v1304
    %v1387 = vsub.f32 %v1249, %v1341
    %v1388 = vsub.f32 %v1250, %v1304
    %v1389 = vsub.f32 %v1251, %v1341
    %v1390 = vsub.f32 %v1252, %v1304
    %v1391 = vsub.f32 %v1253, %v1341
    %v1392 = vsub.f32 %v1254, %v1304
    %v1393 = vsub.f32 %v1255, %v1341
    %v1394 = vsub.f32 %v1256, %v1304
    %v1395 = vsub.f32 %v1257, %v1341
    %v1396 = vsub.f32 %v1258, %v1304
    %v1397 = vsub.f32 %v1259, %v1341
    %v1398 = vsub.f32 %v1260, %v1304
    %v1399 = vsub.f32 %v1261, %v1341
    %v1400 = vsub.f32 %v1262, %v1304
    %v1401 = vsub.f32 %v1263, %v1341
    %v1402 = vsub.f32 %v1264, %v1304
    %v1403 = vsub.f32 %v1265, %v1341
    %v1404 = vsub.f32 %v1266, %v1304
    %v1405 = vsub.f32 %v1267, %v1341
    %v1406 = vmul.f32 %v1342, 1.442695
    %v1407 = vpow.pop %v1406
    %v1408 = vmul.f32 %v1343, 1.442695
    %v1409 = vpow.pop %v1408
    %v1410 = vmul.f32 %v1344, 1.442695
    %v1411 = vpow.pop %v1410
    %v1412 = vmul.f32 %v1345, 1.442695
    %v1413 = vpow.pop %v1412
    %v1414 = vmul.f32 %v1346, 1.442695
    %v1415 = vpow.pop %v1414
    %v1416 = vmul.f32 %v1347, 1.442695
    %v1417 = vpow.pop %v1416
    %v1418 = vmul.f32 %v1348, 1.442695
    %v1419 = vpow.pop %v1418
    %v1420 = vmul.f32 %v1349, 1.442695
    %v1421 = vpow.pop %v1420
    %v1422 = vmul.f32 %v1350, 1.442695
    %v1423 = vpow.pop %v1422
    %v1424 = vmul.f32 %v1351, 1.442695
    %v1425 = vpow.pop %v1424
    %v1426 = vmul.f32 %v1352, 1.442695
    %v1427 = vpow.pop %v1426
    %v1428 = vmul.f32 %v1353, 1.442695
    %v1429 = vpow.pop %v1428
    %v1430 = vmul.f32 %v1354, 1.442695
    %v1431 = vpow.pop %v1430
    %v1432 = vmul.f32 %v1355, 1.442695
    %v1433 = vpow.pop %v1432
    %v1434 = vmul.f32 %v1356, 1.442695
    %v1435 = vpow.pop %v1434
    %v1436 = vmul.f32 %v1357, 1.442695
    %v1437 = vpow.pop %v1436
    %v1438 = vmul.f32 %v1358, 1.442695
    %v1439 = vpow.pop %v1438
    %v1440 = vmul.f32 %v1359, 1.442695
    %v1441 = vpow.pop %v1440
    %v1442 = vmul.f32 %v1360, 1.442695
    %v1443 = vpow.pop %v1442
    %v1444 = vmul.f32 %v1361, 1.442695
    %v1445 = vpow.pop %v1444
    %v1446 = vmul.f32 %v1362, 1.442695
    %v1447 = vpow.pop %v1446
    %v1448 = vmul.f32 %v1363, 1.442695
    %v1449 = vpow.pop %v1448
    %v1450 = vmul.f32 %v1364, 1.442695
    %v1451 = vpow.pop %v1450
    %v1452 = vmul.f32 %v1365, 1.442695
    %v1453 = vpow.pop %v1452
    %v1454 = vmul.f32 %v1366, 1.442695
    %v1455 = vpow.pop %v1454
    %v1456 = vmul.f32 %v1367, 1.442695
    %v1457 = vpow.pop %v1456
    %v1458 = vmul.f32 %v1368, 1.442695
    %v1459 = vpow.pop %v1458
    %v1460 = vmul.f32 %v1369, 1.442695
    %v1461 = vpow.pop %v1460
    %v1462 = vmul.f32 %v1370, 1.442695
    %v1463 = vpow.pop %v1462
    %v1464 = vmul.f32 %v1371, 1.442695
    %v1465 = vpow.pop %v1464
    %v1466 = vmul.f32 %v1372, 1.442695
    %v1467 = vpow.pop %v1466
    %v1468 = vmul.f32 %v1373, 1.442695
    %v1469 = vpow.pop %v1468
    %v1470 = vmul.f32 %v1374, 1.442695
    %v1471 = vpow.pop %v1470
    %v1472 = vmul.f32 %v1375, 1.442695
    %v1473 = vpow.pop %v1472
    %v1474 = vmul.f32 %v1376, 1.442695
    %v1475 = vpow.pop %v1474
    %v1476 = vmul.f32 %v1377, 1.442695
    %v1477 = vpow.pop %v1476
    %v1478 = vmul.f32 %v1378, 1.442695
    %v1479 = vpow.pop %v1478
    %v1480 = vmul.f32 %v1379, 1.442695
    %v1481 = vpow.pop %v1480
    %v1482 = vmul.f32 %v1380, 1.442695
    %v1483 = vpow.pop %v1482
    %v1484 = vmul.f32 %v1381, 1.442695
    %v1485 = vpow.pop %v1484
    %v1486 = vmul.f32 %v1382, 1.442695
    %v1487 = vpow.pop %v1486
    %v1488 = vmul.f32 %v1383, 1.442695
    %v1489 = vpow.pop %v1488
    %v1490 = vmul.f32 %v1384, 1.442695
    %v1491 = vpow.pop %v1490
    %v1492 = vmul.f32 %v1385, 1.442695
    %v1493 = vpow.pop %v1492
    %v1494 = vmul.f32 %v1386, 1.442695
    %v1495 = vpow.pop %v1494
    %v1496 = vmul.f32 %v1387, 1.442695
    %v1497 = vpow.pop %v1496
    %v1498 = vmul.f32 %v1388, 1.442695
    %v1499 = vpow.pop %v1498
    %v1500 = vmul.f32 %v1389, 1.442695
    %v1501 = vpow.pop %v1500
    %v1502 = vmul.f32 %v1390, 1.442695
    %v1503 = vpow.pop %v1502
    %v1504 = vmul.f32 %v1391, 1.442695
    %v1505 = vpow.pop %v1504
    %v1506 = vmul.f32 %v1392, 1.442695
    %v1507 = vpow.pop %v1506
    %v1508 = vmul.f32 %v1393, 1.442695
    %v1509 = vpow.pop %v1508
    %v1510 = vmul.f32 %v1394, 1.442695
    %v1511 = vpow.pop %v1510
    %v1512 = vmul.f32 %v1395, 1.442695
    %v1513 = vpow.pop %v1512
    %v1514 = vmul.f32 %v1396, 1.442695
    %v1515 = vpow.pop %v1514
    %v1516 = vmul.f32 %v1397, 1.442695
    %v1517 = vpow.pop %v1516
    %v1518 = vmul.f32 %v1398, 1.442695
    %v1519 = vpow.pop %v1518
    %v1520 = vmul.f32 %v1399, 1.442695
    %v1521 = vpow.pop %v1520
    %v1522 = vmul.f32 %v1400, 1.442695
    %v1523 = vpow.pop %v1522
    %v1524 = vmul.f32 %v1401, 1.442695
    %v1525 = vpow.pop %v1524
    %v1526 = vmul.f32 %v1402, 1.442695
    %v1527 = vpow.pop %v1526
    %v1528 = vmul.f32 %v1403, 1.442695
    %v1529 = vpow.pop %v1528
    %v1530 = vmul.f32 %v1404, 1.442695
    %v1531 = vpow.pop %v1530
    %v1532 = vmul.f32 %v1405, 1.442695
    %v1533 = vpow.pop %v1532
    %v1534 = vadd.f32 %v1407, %v1411
    %v1535 = vadd.f32 %v1534, %v1415
    %v1536 = vadd.f32 %v1535, %v1419
    %v1537 = vadd.f32 %v1536, %v1423
    %v1538 = vadd.f32 %v1537, %v1427
    %v1539 = vadd.f32 %v1538, %v1431
    %v1540 = vadd.f32 %v1539, %v1435
    %v1541 = vadd.f32 %v1540, %v1439
    %v1542 = vadd.f32 %v1541, %v1443
    %v1543 = vadd.f32 %v1542, %v1447
    %v1544 = vadd.f32 %v1543, %v1451
    %v1545 = vadd.f32 %v1544, %v1455
    %v1546 = vadd.f32 %v1545, %v1459
    %v1547 = vadd.f32 %v1546, %v1463
    %v1548 = vadd.f32 %v1547, %v1467
    %v1549 = vadd.f32 %v1548, %v1471
    %v1550 = vadd.f32 %v1549, %v1475
    %v1551 = vadd.f32 %v1550, %v1479
    %v1552 = vadd.f32 %v1551, %v1483
    %v1553 = vadd.f32 %v1552, %v1487
    %v1554 = vadd.f32 %v1553, %v1491
    %v1555 = vadd.f32 %v1554, %v1495
    %v1556 = vadd.f32 %v1555, %v1499
    %v1557 = vadd.f32 %v1556, %v1503
    %v1558 = vadd.f32 %v1557, %v1507
    %v1559 = vadd.f32 %v1558, %v1511
    %v1560 = vadd.f32 %v1559, %v1515
    %v1561 = vadd.f32 %v1560, %v1519
    %v1562 = vadd.f32 %v1561, %v1523
    %v1563 = vadd.f32 %v1562, %v1527
    %v1564 = vadd.f32 %v1563, %v1531
    %v1565 = vrot.slane %v1564, 4
    %v1566 = vadd.f32 %v1564, %v1565
    %v1567 = vrot.slane %v1566, 2
    %v1568 = vadd.f32 %v1566, %v1567
    %v1569 = vrot.slane %v1568, 1
    %v1570 = vadd.f32 %v1568, %v1569
    %v1571 = vadd.f32 %v1409, %v1413
    %v1572 = vadd.f32 %v1571, %v1417
    %v1573 = vadd.f32 %v1572, %v1421
    %v1574 = vadd.f32 %v1573, %v1425
    %v1575 = vadd.f32 %v1574, %v1429
    %v1576 = vadd.f32 %v1575, %v1433
    %v1577 = vadd.f32 %v1576, %v1437
    %v1578 = vadd.f32 %v1577, %v1441
    %v1579 = vadd.f32 %v1578, %v1445
    %v1580 = vadd.f32 %v1579, %v1449
    %v1581 = vadd.f32 %v1580, %v1453
    %v1582 = vadd.f32 %v1581, %v1457
    %v1583 = vadd.f32 %v1582, %v1461
    %v1584 = vadd.f32 %v1583, %v1465
    %v1585 = vadd.f32 %v1584, %v1469
    %v1586 = vadd.f32 %v1585, %v1473
    %v1587 = vadd.f32 %v1586, %v1477
    %v1588 = vadd.f32 %v1587, %v1481
    %v1589 = vadd.f32 %v1588, %v1485
    %v1590 = vadd.f32 %v1589, %v1489
    %v1591 = vadd.f32 %v1590, %v1493
    %v1592 = vadd.f32 %v1591, %v1497
    %v1593 = vadd.f32 %v1592, %v1501
    %v1594 = vadd.f32 %v1593, %v1505
    %v1595 = vadd.f32 %v1594, %v1509
    %v1596 = vadd.f32 %v1595, %v1513
    %v1597 = vadd.f32 %v1596, %v1517
    %v1598 = vadd.f32 %v1597, %v1521
    %v1599 = vadd.f32 %v1598, %v1525
    %v1600 = vadd.f32 %v1599, %v1529
    %v1601 = vadd.f32 %v1600, %v1533
    %v1602 = vrot.slane %v1601, 4
    %v1603 = vadd.f32 %v1601, %v1602
    %v1604 = vrot.slane %v1603, 2
    %v1605 = vadd.f32 %v1603, %v1604
    %v1606 = vrot.slane %v1605, 1
    %v1607 = vadd.f32 %v1605, %v1606
    %v1608 = vlog2.pop %v1570
    %v1609 = vmul.f32 %v1608, 0.6931472
    %v1610 = vlog2.pop %v1607
    %v1611 = vmul.f32 %v1610, 0.6931472
    %v1612 = vadd.f32 %v1304, %v1609
    %v1613 = vadd.f32 %v1341, %v1611
    %v1614 = vsub.f32 %v1204, %v1612
    %v1615 = vsub.f32 %v1205, %v1613
    %v1616 = vsub.f32 %v1206, %v1612
    %v1617 = vsub.f32 %v1207, %v1613
    %v1618 = vsub.f32 %v1208, %v1612
    %v1619 = vsub.f32 %v1209, %v1613
    %v1620 = vsub.f32 %v1210, %v1612
    %v1621 = vsub.f32 %v1211, %v1613
    %v1622 = vsub.f32 %v1212, %v1612
    %v1623 = vsub.f32 %v1213, %v1613
    %v1624 = vsub.f32 %v1214, %v1612
    %v1625 = vsub.f32 %v1215, %v1613
    %v1626 = vsub.f32 %v1216, %v1612
    %v1627 = vsub.f32 %v1217, %v1613
    %v1628 = vsub.f32 %v1218, %v1612
    %v1629 = vsub.f32 %v1219, %v1613
    %v1630 = vsub.f32 %v1220, %v1612
    %v1631 = vsub.f32 %v1221, %v1613
    %v1632 = vsub.f32 %v1222, %v1612
    %v1633 = vsub.f32 %v1223, %v1613
    %v1634 = vsub.f32 %v1224, %v1612
    %v1635 = vsub.f32 %v1225, %v1613
    %v1636 = vsub.f32 %v1226, %v1612
    %v1637 = vsub.f32 %v1227, %v1613
    %v1638 = vsub.f32 %v1228, %v1612
    %v1639 = vsub.f32 %v1229, %v1613
    %v1640 = vsub.f32 %v1230, %v1612
    %v1641 = vsub.f32 %v1231, %v1613
    %v1642 = vsub.f32 %v1232, %v1612
    %v1643 = vsub.f32 %v1233, %v1613
    %v1644 = vsub.f32 %v1234, %v1612
    %v1645 = vsub.f32 %v1235, %v1613
    %v1646 = vsub.f32 %v1236, %v1612
    %v1647 = vsub.f32 %v1237, %v1613
    %v1648 = vsub.f32 %v1238, %v1612
    %v1649 = vsub.f32 %v1239, %v1613
    %v1650 = vsub.f32 %v1240, %v1612
    %v1651 = vsub.f32 %v1241, %v1613
    %v1652 = vsub.f32 %v1242, %v1612
    %v1653 = vsub.f32 %v1243, %v1613
    %v1654 = vsub.f32 %v1244, %v1612
    %v1655 = vsub.f32 %v1245, %v1613
    %v1656 = vsub.f32 %v1246, %v1612
    %v1657 = vsub.f32 %v1247, %v1613
    %v1658 = vsub.f32 %v1248, %v1612
    %v1659 = vsub.f32 %v1249, %v1613
    %v1660 = vsub.f32 %v1250, %v1612
    %v1661 = vsub.f32 %v1251, %v1613
    %v1662 = vsub.f32 %v1252, %v1612
    %v1663 = vsub.f32 %v1253, %v1613
    %v1664 = vsub.f32 %v1254, %v1612
    %v1665 = vsub.f32 %v1255, %v1613
    %v1666 = vsub.f32 %v1256, %v1612
    %v1667 = vsub.f32 %v1257, %v1613
    %v1668 = vsub.f32 %v1258, %v1612
    %v1669 = vsub.f32 %v1259, %v1613
    %v1670 = vsub.f32 %v1260, %v1612
    %v1671 = vsub.f32 %v1261, %v1613
    %v1672 = vsub.f32 %v1262, %v1612
    %v1673 = vsub.f32 %v1263, %v1613
    %v1674 = vsub.f32 %v1264, %v1612
    %v1675 = vsub.f32 %v1265, %v1613
    %v1676 = vsub.f32 %v1266, %v1612
    %v1677 = vsub.f32 %v1267, %v1613
    %1678 = vst [vmem:[#allocation2] sm:$0xff] %v1614
    %1679 = vst [vmem:[#allocation2 + $0x8] sm:$0xff] %v1615
    %1680 = vst [vmem:[#allocation2 + $0x10] sm:$0xff] %v1616
    %1681 = vst [vmem:[#allocation2 + $0x18] sm:$0xff] %v1617
    %1682 = vst [vmem:[#allocation2 + $0x20] sm:$0xff] %v1618
    %1683 = vst [vmem:[#allocation2 + $0x28] sm:$0xff] %v1619
    %1684 = vst [vmem:[#allocation2 + $0x30] sm:$0xff] %v1620
    %1685 = vst [vmem:[#allocation2 + $0x38] sm:$0xff] %v1621
    %1686 = vst [vmem:[#allocation2 + $0x40] sm:$0xff] %v1622
    %1687 = vst [vmem:[#allocation2 + $0x48] sm:$0xff] %v1623
    %1688 = vst [vmem:[#allocation2 + $0x50] sm:$0xff] %v1624
    %1689 = vst [vmem:[#allocation2 + $0x58] sm:$0xff] %v1625
    %1690 = vst [vmem:[#allocation2 + $0x60] sm:$0xff] %v1626
    %1691 = vst [vmem:[#allocation2 + $0x68] sm:$0xff] %v1627
    %1692 = vst [vmem:[#allocation2 + $0x70] sm:$0xff] %v1628
    %1693 = vst [vmem:[#allocation2 + $0x78] sm:$0xff] %v1629
    %1694 = vst [vmem:[#allocation2 + $0x80] sm:$0xff] %v1630
    %1695 = vst [vmem:[#allocation2 + $0x88] sm:$0xff] %v1631
    %1696 = vst [vmem:[#allocation2 + $0x90] sm:$0xff] %v1632
    %1697 = vst [vmem:[#allocation2 + $0x98] sm:$0xff] %v1633
    %1698 = vst [vmem:[#allocation2 + $0xa0] sm:$0xff] %v1634
    %1699 = vst [vmem:[#allocation2 + $0xa8] sm:$0xff] %v1635
    %1700 = vst [vmem:[#allocation2 + $0xb0] sm:$0xff] %v1636
    %1701 = vst [vmem:[#allocation2 + $0xb8] sm:$0xff] %v1637
    %1702 = vst [vmem:[#allocation2 + $0xc0] sm:$0xff] %v1638
    %1703 = vst [vmem:[#allocation2 + $0xc8] sm:$0xff] %v1639
    %1704 = vst [vmem:[#allocation2 + $0xd0] sm:$0xff] %v1640
    %1705 = vst [vmem:[#allocation2 + $0xd8] sm:$0xff] %v1641
    %1706 = vst [vmem:[#allocation2 + $0xe0] sm:$0xff] %v1642
    %1707 = vst [vmem:[#allocation2 + $0xe8] sm:$0xff] %v1643
    %1708 = vst [vmem:[#allocation2 + $0xf0] sm:$0xff] %v1644
    %1709 = vst [vmem:[#allocation2 + $0xf8] sm:$0xff] %v1645
    %1710 = vst [vmem:[#allocation2 + $0x100] sm:$0xff] %v1646
    %1711 = vst [vmem:[#allocation2 + $0x108] sm:$0xff] %v1647
    %1712 = vst [vmem:[#allocation2 + $0x110] sm:$0xff] %v1648
    %1713 = vst [vmem:[#allocation2 + $0x118] sm:$0xff] %v1649
    %1714 = vst [vmem:[#allocation2 + $0x120] sm:$0xff] %v1650
    %1715 = vst [vmem:[#allocation2 + $0x128] sm:$0xff] %v1651
    %1716 = vst [vmem:[#allocation2 + $0x130] sm:$0xff] %v1652
    %1717 = vst [vmem:[#allocation2 + $0x138] sm:$0xff] %v1653
    %1718 = vst [vmem:[#allocation2 + $0x140] sm:$0xff] %v1654
    %1719 = vst [vmem:[#allocation2 + $0x148] sm:$0xff] %v1655
    %1720 = vst [vmem:[#allocation2 + $0x150] sm:$0xff] %v1656
    %1721 = vst [vmem:[#allocation2 + $0x158] sm:$0xff] %v1657
    %1722 = vst [vmem:[#allocation2 + $0x160] sm:$0xff] %v1658
    %1723 = vst [vmem:[#allocation2 + $0x168] sm:$0xff] %v1659
    %1724 = vst [vmem:[#allocation2 + $0x170] sm:$0xff] %v1660
    %1725 = vst [vmem:[#allocation2 + $0x178] sm:$0xff] %v1661
    %1726 = vst [vmem:[#allocation2 + $0x180] sm:$0xff] %v1662
    %1727 = vst [vmem:[#allocation2 + $0x188] sm:$0xff] %v1663
    %1728 = vst [vmem:[#allocation2 + $0x190] sm:$0xff] %v1664
    %1729 = vst [vmem:[#allocation2 + $0x198] sm:$0xff] %v1665
    %1730 = vst [vmem:[#allocation2 + $0x1a0] sm:$0xff] %v1666
    %1731 = vst [vmem:[#allocation2 + $0x1a8] sm:$0xff] %v1667
    %1732 = vst [vmem:[#allocation2 + $0x1b0] sm:$0xff] %v1668
    %1733 = vst [vmem:[#allocation2 + $0x1b8] sm:$0xff] %v1669
    %1734 = vst [vmem:[#allocation2 + $0x1c0] sm:$0xff] %v1670
    %1735 = vst [vmem:[#allocation2 + $0x1c8] sm:$0xff] %v1671
    %1736 = vst [vmem:[#allocation2 + $0x1d0] sm:$0xff] %v1672
    %1737 = vst [vmem:[#allocation2 + $0x1d8] sm:$0xff] %v1673
    %1738 = vst [vmem:[#allocation2 + $0x1e0] sm:$0xff] %v1674
    %1739 = vst [vmem:[#allocation2 + $0x1e8] sm:$0xff] %v1675
    %1740 = vst [vmem:[#allocation2 + $0x1f0] sm:$0xff] %v1676
    %1741 = vst [vmem:[#allocation2 + $0x1f8] sm:$0xff] %v1677
    // Predicated region
    $region22: #{tpu_custom_call.1} parent=1 // pred_check
      _
    $region23: #{tpu_custom_call.1} parent=1 // pred_check_branch
      %1743 = sbr.rel (0) target = $region25
    $region24: #{tpu_custom_call.1} parent=1 // pred_region
      %s1745 = ssub.s32 8192, 8192
      %1746 = vsyncadd [#allocation3], %s1745
      %s1747 = sshll.u32 [#allocation2], 4
      %s1748 = int_to_ptr.vmem [resolvable:$true] %s1747
      %1753 = dma.vmem_to_hbm [thread:$0]  %s1748, 8192, %s5, [#allocation3], 256, 256, 16
    $region25: #{tpu_custom_call.1} parent=1 // pred_fallthru
      _
    // Predicated region
    $region26: #{tpu_custom_call.1} parent=1 // pred_check
      _
    $region27: #{tpu_custom_call.1} parent=1 // pred_check_branch
      %1755 = sbr.rel (0) target = $region29
    $region28: #{tpu_custom_call.1} parent=1 // pred_region
      %1756 = dma.done [#allocation3], 8192
    $region29: #{tpu_custom_call.1} parent=1 // pred_fallthru
      _
    %1757 = vsyncpa [#allocation3], 1

</llo_original>
